<compile_context>
chip_gen: v6e
topology: v6e:2x2x1
jax: 0.10.0
libtpu: 0.0.40
codegen_flags: <defaults>
</compile_context>

<pallas_src>
import jax
import jax.numpy as jnp
from jax import lax
from jax.experimental import pallas as pl
from jax.experimental.pallas import tpu as pltpu


def rnn_fc_kernel(x_ref,                        # (T, Bt, D_in)
                  wih1_ref, whh1_ref, b1_ref,   # (D_in, H), (H, H), (1, H)
                  w2cat_ref, b2_ref,            # (2H, H), (1, H)
                  wfc1_ref, bfc1_ref,           # (H, 64),  (1, 64)
                  wfc2_ref, bfc2_ref,           # (64, Cp), (1, Cp)
                  out_ref,                      # (Bt, Cp)
                  xw1_ref):                     # VMEM scratch (T, Bt, H)
    T, B, D = x_ref.shape
    H = whh1_ref.shape[0]

    # Hoisted layer-1 input projection (+ fused bias): one big MXU matmul
    # instead of T tiny ones inside the serial recurrence.
    x_all = x_ref[...].reshape(T * B, D)
    xw1_ref[...] = (
        jnp.dot(x_all, wih1_ref[...], preferred_element_type=jnp.float32)
        + b1_ref[...]
    ).reshape(T, B, H)

    # Hoisted bias broadcast for layer 2 (JAX does not CSE broadcast_in_dim).
    b2 = jnp.broadcast_to(b2_ref[...], (B, H))

    h1_init = jnp.zeros((B, H), jnp.float32)
    h2_init = jnp.zeros((B, H), jnp.float32)

    def step(t, carry):
        h1, h2 = carry
        # Layer 1: only the recurrent matmul is left on the serial chain.
        h1_new = jnp.tanh(
            xw1_ref[t]
            + jnp.dot(h1, whh1_ref[...], preferred_element_type=jnp.float32))
        # TODO(synk): inter-layer dropout of nn.RNN(dropout=0.5) is a no-op in
        # eval mode; training-mode stochastic dropout is not implemented here.
        # Layer 2: single fused matmul  [h1_new | h2] @ [W_ih2^T ; W_hh2^T].
        h12 = jnp.concatenate([h1_new, h2], axis=1)        # (B, 2H)
        h2_new = jnp.tanh(
            jnp.dot(h12, w2cat_ref[...], preferred_element_type=jnp.float32)
            + b2)
        return (h1_new, h2_new)

    # Fully unroll the (static, short) time loop for scheduler visibility.
    h1, h2 = lax.fori_loop(0, T, step, (h1_init, h2_init), unroll=True)

    # FC head on the last-timestep hidden state of layer 2:
    # Linear(H, 64) -> ReLU -> Dropout(identity in eval) -> Linear(64, C)
    z = jnp.dot(h2, wfc1_ref[...], preferred_element_type=jnp.float32) + bfc1_ref[...]
    z = jnp.maximum(z, 0.0)
    out_ref[...] = (jnp.dot(z, wfc2_ref[...], preferred_element_type=jnp.float32)
                    + bfc2_ref[...])


def rnn_net_forward(x, params):
    """x: (B, T, D_in) float32, batch_first like the PyTorch module."""
    B, T, D = x.shape
    H = params["w_hh_l0"].shape[0]
    C = params["w_fc2"].shape[0]
    F1 = params["w_fc1"].shape[0]          # 64

    # time-major for the kernel: each timestep is a contiguous (B, D) slab.
    x_tm = jnp.transpose(x, (1, 0, 2))     # (T, B, D)

    # Pre-transpose weights so kernel does row-major matmuls; fold the two
    # per-layer biases (b_ih + b_hh) into one.
    wih1 = params["w_ih_l0"].T                             # (D, H)
    whh1 = params["w_hh_l0"].T                             # (H, H)
    b1 = (params["b_ih_l0"] + params["b_hh_l0"]).reshape(1, H)
    # Layer-2 fused weights: rows = [W_ih2^T ; W_hh2^T]  -> (2H, H)
    w2cat = jnp.concatenate([params["w_ih_l1"].T, params["w_hh_l1"].T], axis=0)
    b2 = (params["b_ih_l1"] + params["b_hh_l1"]).reshape(1, H)
    wfc1 = params["w_fc1"].T                               # (H, 64)
    bfc1 = params["b_fc1"].reshape(1, F1)                  # (1, 64)

    # Lane-dense output: pad the FC2 columns to a multiple of 128 so the final
    # store is an unmasked vst; slice back to C outside the kernel.
    C_pad = max(128, ((C + 127) // 128) * 128)
    wfc2 = jnp.zeros((F1, C_pad), jnp.float32).at[:, :C].set(params["w_fc2"].T)
    bfc2 = jnp.zeros((1, C_pad), jnp.float32).at[:, :C].set(
        params["b_fc2"].reshape(1, C))

    # Batch-parallel grid (v7x has 2 TensorCores; harmless single grid point
    # elsewhere).  Batch tiles must be a multiple of 8 sublanes unless they
    # span the full batch.
    if B % 16 == 0:
        b_tile = B // 2
    else:
        b_tile = B
    n_b = B // b_tile

    def full_spec(shape):
        return pl.BlockSpec(shape, lambda b: (0,) * len(shape))

    grid_spec = pltpu.PrefetchScalarGridSpec(
        num_scalar_prefetch=0,
        grid=(n_b,),
        in_specs=[
            pl.BlockSpec((T, b_tile, D), lambda b: (0, b, 0)),   # x (batch-tiled)
            full_spec(wih1.shape), full_spec(whh1.shape), full_spec(b1.shape),
            full_spec(w2cat.shape), full_spec(b2.shape),
            full_spec(wfc1.shape), full_spec(bfc1.shape),
            full_spec(wfc2.shape), full_spec(bfc2.shape),
        ],
        out_specs=pl.BlockSpec((b_tile, C_pad), lambda b: (b, 0)),
        scratch_shapes=[pltpu.VMEM((T, b_tile, H), jnp.float32)],
    )

    # NOTE: for large H (>=256) on v6e/v7x, cast matmul operands to bf16
    # (keep f32 accumulate/carries); skipped here to stay bit-close to the
    # f32 reference at toy sizes.
    out_padded = pl.pallas_call(
        rnn_fc_kernel,
        out_shape=jax.ShapeDtypeStruct((B, C_pad), jnp.float32),
        grid_spec=grid_spec,
        compiler_params=pltpu.CompilerParams(
            dimension_semantics=("parallel",),
            vmem_limit_bytes=32 * 1024 * 1024,
        ),
    )(x_tm, wih1, whh1, b1, w2cat, b2, wfc1, bfc1, wfc2, bfc2)
    return out_padded[:, :C]


def reference_forward(x, params):
    """Pure-JAX reference matching torch semantics (eval mode)."""
    B, T, D = x.shape
    H = params["w_hh_l0"].shape[0]
    h1 = jnp.zeros((B, H), jnp.float32)
    h2 = jnp.zeros((B, H), jnp.float32)
    for t in range(T):
        xt = x[:, t, :]
        h1 = jnp.tanh(xt @ params["w_ih_l0"].T + params["b_ih_l0"]
                      + h1 @ params["w_hh_l0"].T + params["b_hh_l0"])
        h2 = jnp.tanh(h1 @ params["w_ih_l1"].T + params["b_ih_l1"]
                      + h2 @ params["w_hh_l1"].T + params["b_hh_l1"])
    z = jnp.maximum(h2 @ params["w_fc1"].T + params["b_fc1"], 0.0)
    return z @ params["w_fc2"].T + params["b_fc2"]


def init_params(key, input_size, hidden_size, num_classes):
    """Deterministic init mimicking PyTorch's U(-1/sqrt(H), 1/sqrt(H))."""
    ks = jax.random.split(key, 12)
    H, D, C = hidden_size, input_size, num_classes
    s_rnn = 1.0 / jnp.sqrt(H)
    s_fc1 = 1.0 / jnp.sqrt(H)
    s_fc2 = 1.0 / jnp.sqrt(64)
    u = lambda k, shape, s: jax.random.uniform(k, shape, jnp.float32, -s, s)
    return {
        "w_ih_l0": u(ks[0], (H, D), s_rnn),
        "w_hh_l0": u(ks[1], (H, H), s_rnn),
        "b_ih_l0": u(ks[2], (H,), s_rnn),
        "b_hh_l0": u(ks[3], (H,), s_rnn),
        "w_ih_l1": u(ks[4], (H, H), s_rnn),
        "w_hh_l1": u(ks[5], (H, H), s_rnn),
        "b_ih_l1": u(ks[6], (H,), s_rnn),
        "b_hh_l1": u(ks[7], (H,), s_rnn),
        "w_fc1": u(ks[8], (64, H), s_fc1),
        "b_fc1": u(ks[9], (64,), s_fc1),
        "w_fc2": u(ks[10], (C, 64), s_fc2),
        "b_fc2": u(ks[11], (C,), s_fc2),
    }


if __name__ == "__main__":
    B, T, D_IN, HIDDEN, NUM_CLASSES = 4, 8, 16, 32, 5

    key = jax.random.PRNGKey(0)
    k_x, k_p = jax.random.split(key)
    x = jax.random.normal(k_x, (B, T, D_IN), jnp.float32)
    params = init_params(k_p, D_IN, HIDDEN, NUM_CLASSES)

    out = rnn_net_forward(x, params)
    out = jax.block_until_ready(out)

    ref = reference_forward(x, params)
    assert out.shape == (B, NUM_CLASSES)
    assert jnp.allclose(out, ref, atol=1e-5, rtol=1e-5), "mismatch vs reference"

    print("KERNEL_OK")
</pallas_src>

<mosaic_0001>
module attributes {stable_mosaic.version = 11 : i64} {
  func.func @rnn_fc_kernel(%arg0: i32, %arg1: memref<8x4x16xf32, #tpu.memory_space<vmem>>, %arg2: memref<16x32xf32, #tpu.memory_space<vmem>>, %arg3: memref<32x32xf32, #tpu.memory_space<vmem>>, %arg4: memref<1x32xf32, #tpu.memory_space<vmem>>, %arg5: memref<64x32xf32, #tpu.memory_space<vmem>>, %arg6: memref<1x32xf32, #tpu.memory_space<vmem>>, %arg7: memref<32x64xf32, #tpu.memory_space<vmem>>, %arg8: memref<1x64xf32, #tpu.memory_space<vmem>>, %arg9: memref<64x128xf32, #tpu.memory_space<vmem>>, %arg10: memref<1x128xf32, #tpu.memory_space<vmem>>, %arg11: memref<4x128xf32, #tpu.memory_space<vmem>>, %arg12: memref<8x4x32xf32, #tpu.memory_space<vmem>>) attributes {dimension_semantics = [#tpu.dimension_semantics<parallel>], iteration_bounds = array<i64: 1>, scalar_prefetch = 0 : i64, scratch_operands = 1 : i64, tpu.core_type = #tpu.core_type<tc>, window_params = [{transform_indices = @transform_0, window_bounds = array<i64: 8, 4, 16>}, {pipeline_mode = #tpu.pipeline_mode<synchronous>, transform_indices = @transform_1, window_bounds = array<i64: 16, 32>}, {pipeline_mode = #tpu.pipeline_mode<synchronous>, transform_indices = @transform_2, window_bounds = array<i64: 32, 32>}, {pipeline_mode = #tpu.pipeline_mode<synchronous>, transform_indices = @transform_3, window_bounds = array<i64: 1, 32>}, {pipeline_mode = #tpu.pipeline_mode<synchronous>, transform_indices = @transform_4, window_bounds = array<i64: 64, 32>}, {pipeline_mode = #tpu.pipeline_mode<synchronous>, transform_indices = @transform_5, window_bounds = array<i64: 1, 32>}, {pipeline_mode = #tpu.pipeline_mode<synchronous>, transform_indices = @transform_6, window_bounds = array<i64: 32, 64>}, {pipeline_mode = #tpu.pipeline_mode<synchronous>, transform_indices = @transform_7, window_bounds = array<i64: 1, 64>}, {pipeline_mode = #tpu.pipeline_mode<synchronous>, transform_indices = @transform_8, window_bounds = array<i64: 64, 128>}, {pipeline_mode = #tpu.pipeline_mode<synchronous>, transform_indices = @transform_9, window_bounds = array<i64: 1, 128>}, {transform_indices = @transform_10, window_bounds = array<i64: 4, 128>}]} {
    %c0 = arith.constant 0 : index
    %c0_0 = arith.constant 0 : index
    %c0_1 = arith.constant 0 : index
    %0 = vector.load %arg1[%c0, %c0_0, %c0_1] : memref<8x4x16xf32, #tpu.memory_space<vmem>>, vector<8x4x16xf32>
    %1 = vector.shape_cast %0 : vector<8x4x16xf32> to vector<32x16xf32>
    %c0_2 = arith.constant 0 : index
    %c0_3 = arith.constant 0 : index
    %2 = vector.load %arg2[%c0_2, %c0_3] : memref<16x32xf32, #tpu.memory_space<vmem>>, vector<16x32xf32>
    %cst = arith.constant dense<0.000000e+00> : vector<32x32xf32>
    %3 = tpu.matmul %1, %2, %cst {dimension_numbers = #tpu.dot_dimension_numbers<[1], [0], [0], [1], [0, 0, 1, 1], [], []>} : vector<32x16xf32>, vector<16x32xf32>, vector<32x32xf32> -> vector<32x32xf32>
    %c0_4 = arith.constant 0 : index
    %c0_5 = arith.constant 0 : index
    %4 = vector.load %arg4[%c0_4, %c0_5] : memref<1x32xf32, #tpu.memory_space<vmem>>, vector<1x32xf32>
    %5 = vector.broadcast %4 : vector<1x32xf32> to vector<32x32xf32>
    %6 = arith.addf %3, %5 : vector<32x32xf32>
    %7 = vector.shape_cast %6 : vector<32x32xf32> to vector<8x4x32xf32>
    %c0_6 = arith.constant 0 : index
    %c0_7 = arith.constant 0 : index
    %c0_8 = arith.constant 0 : index
    %8 = vector.load %arg12[%c0_6, %c0_7, %c0_8] : memref<8x4x32xf32, #tpu.memory_space<vmem>>, vector<8x4x32xf32>
    tpu.vector_store %arg12[%c0_6, %c0_7, %c0_8], %7 {strides = array<i32>} : memref<8x4x32xf32, #tpu.memory_space<vmem>>, vector<8x4x32xf32>,
    %c0_9 = arith.constant 0 : index
    %c0_10 = arith.constant 0 : index
    %9 = vector.load %arg6[%c0_9, %c0_10] : memref<1x32xf32, #tpu.memory_space<vmem>>, vector<1x32xf32>
    %10 = vector.shape_cast %9 : vector<1x32xf32> to vector<1x32xf32>
    %11 = vector.broadcast %10 : vector<1x32xf32> to vector<4x32xf32>
    %cst_11 = arith.constant 0.000000e+00 : f32
    %12 = vector.broadcast %cst_11 : f32 to vector<4x32xf32>
    %cst_12 = arith.constant 0.000000e+00 : f32
    %13 = vector.broadcast %cst_12 : f32 to vector<4x32xf32>
    %c0_i32 = arith.constant 0 : i32
    %14 = arith.index_cast %c0_i32 : i32 to index
    %c0_13 = arith.constant 0 : index
    %c0_14 = arith.constant 0 : index
    %15 = vector.load %arg12[%14, %c0_13, %c0_14] : memref<8x4x32xf32, #tpu.memory_space<vmem>>, vector<1x4x32xf32>
    %16 = vector.shape_cast %15 : vector<1x4x32xf32> to vector<4x32xf32>
    %c0_15 = arith.constant 0 : index
    %c0_16 = arith.constant 0 : index
    %17 = vector.load %arg3[%c0_15, %c0_16] : memref<32x32xf32, #tpu.memory_space<vmem>>, vector<32x32xf32>
    %cst_17 = arith.constant dense<0.000000e+00> : vector<4x32xf32>
    %18 = tpu.matmul %12, %17, %cst_17 {dimension_numbers = #tpu.dot_dimension_numbers<[1], [0], [0], [1], [0, 0, 1, 1], [], []>} : vector<4x32xf32>, vector<32x32xf32>, vector<4x32xf32> -> vector<4x32xf32>
    %19 = arith.addf %16, %18 : vector<4x32xf32>
    %20 = math.tanh %19 : vector<4x32xf32>
    %21 = tpu.concatenate %20, %13 in 1 : vector<4x32xf32>, vector<4x32xf32> -> vector<4x64xf32>
    %c0_18 = arith.constant 0 : index
    %c0_19 = arith.constant 0 : index
    %22 = vector.load %arg5[%c0_18, %c0_19] : memref<64x32xf32, #tpu.memory_space<vmem>>, vector<64x32xf32>
    %cst_20 = arith.constant dense<0.000000e+00> : vector<4x32xf32>
    %23 = tpu.matmul %21, %22, %cst_20 {dimension_numbers = #tpu.dot_dimension_numbers<[1], [0], [0], [1], [0, 0, 1, 1], [], []>} : vector<4x64xf32>, vector<64x32xf32>, vector<4x32xf32> -> vector<4x32xf32>
    %24 = arith.addf %23, %11 : vector<4x32xf32>
    %25 = math.tanh %24 : vector<4x32xf32>
    %c1_i32 = arith.constant 1 : i32
    %26 = arith.index_cast %c1_i32 : i32 to index
    %c0_21 = arith.constant 0 : index
    %c0_22 = arith.constant 0 : index
    %27 = vector.load %arg12[%26, %c0_21, %c0_22] : memref<8x4x32xf32, #tpu.memory_space<vmem>>, vector<1x4x32xf32>
    %28 = vector.shape_cast %27 : vector<1x4x32xf32> to vector<4x32xf32>
    %c0_23 = arith.constant 0 : index
    %c0_24 = arith.constant 0 : index
    %29 = vector.load %arg3[%c0_23, %c0_24] : memref<32x32xf32, #tpu.memory_space<vmem>>, vector<32x32xf32>
    %cst_25 = arith.constant dense<0.000000e+00> : vector<4x32xf32>
    %30 = tpu.matmul %20, %29, %cst_25 {dimension_numbers = #tpu.dot_dimension_numbers<[1], [0], [0], [1], [0, 0, 1, 1], [], []>} : vector<4x32xf32>, vector<32x32xf32>, vector<4x32xf32> -> vector<4x32xf32>
    %31 = arith.addf %28, %30 : vector<4x32xf32>
    %32 = math.tanh %31 : vector<4x32xf32>
    %33 = tpu.concatenate %32, %25 in 1 : vector<4x32xf32>, vector<4x32xf32> -> vector<4x64xf32>
    %c0_26 = arith.constant 0 : index
    %c0_27 = arith.constant 0 : index
    %34 = vector.load %arg5[%c0_26, %c0_27] : memref<64x32xf32, #tpu.memory_space<vmem>>, vector<64x32xf32>
    %cst_28 = arith.constant dense<0.000000e+00> : vector<4x32xf32>
    %35 = tpu.matmul %33, %34, %cst_28 {dimension_numbers = #tpu.dot_dimension_numbers<[1], [0], [0], [1], [0, 0, 1, 1], [], []>} : vector<4x64xf32>, vector<64x32xf32>, vector<4x32xf32> -> vector<4x32xf32>
    %36 = arith.addf %35, %11 : vector<4x32xf32>
    %37 = math.tanh %36 : vector<4x32xf32>
    %c2_i32 = arith.constant 2 : i32
    %38 = arith.index_cast %c2_i32 : i32 to index
    %c0_29 = arith.constant 0 : index
    %c0_30 = arith.constant 0 : index
    %39 = vector.load %arg12[%38, %c0_29, %c0_30] : memref<8x4x32xf32, #tpu.memory_space<vmem>>, vector<1x4x32xf32>
    %40 = vector.shape_cast %39 : vector<1x4x32xf32> to vector<4x32xf32>
    %c0_31 = arith.constant 0 : index
    %c0_32 = arith.constant 0 : index
    %41 = vector.load %arg3[%c0_31, %c0_32] : memref<32x32xf32, #tpu.memory_space<vmem>>, vector<32x32xf32>
    %cst_33 = arith.constant dense<0.000000e+00> : vector<4x32xf32>
    %42 = tpu.matmul %32, %41, %cst_33 {dimension_numbers = #tpu.dot_dimension_numbers<[1], [0], [0], [1], [0, 0, 1, 1], [], []>} : vector<4x32xf32>, vector<32x32xf32>, vector<4x32xf32> -> vector<4x32xf32>
    %43 = arith.addf %40, %42 : vector<4x32xf32>
    %44 = math.tanh %43 : vector<4x32xf32>
    %45 = tpu.concatenate %44, %37 in 1 : vector<4x32xf32>, vector<4x32xf32> -> vector<4x64xf32>
    %c0_34 = arith.constant 0 : index
    %c0_35 = arith.constant 0 : index
    %46 = vector.load %arg5[%c0_34, %c0_35] : memref<64x32xf32, #tpu.memory_space<vmem>>, vector<64x32xf32>
    %cst_36 = arith.constant dense<0.000000e+00> : vector<4x32xf32>
    %47 = tpu.matmul %45, %46, %cst_36 {dimension_numbers = #tpu.dot_dimension_numbers<[1], [0], [0], [1], [0, 0, 1, 1], [], []>} : vector<4x64xf32>, vector<64x32xf32>, vector<4x32xf32> -> vector<4x32xf32>
    %48 = arith.addf %47, %11 : vector<4x32xf32>
    %49 = math.tanh %48 : vector<4x32xf32>
    %c3_i32 = arith.constant 3 : i32
    %50 = arith.index_cast %c3_i32 : i32 to index
    %c0_37 = arith.constant 0 : index
    %c0_38 = arith.constant 0 : index
    %51 = vector.load %arg12[%50, %c0_37, %c0_38] : memref<8x4x32xf32, #tpu.memory_space<vmem>>, vector<1x4x32xf32>
    %52 = vector.shape_cast %51 : vector<1x4x32xf32> to vector<4x32xf32>
    %c0_39 = arith.constant 0 : index
    %c0_40 = arith.constant 0 : index
    %53 = vector.load %arg3[%c0_39, %c0_40] : memref<32x32xf32, #tpu.memory_space<vmem>>, vector<32x32xf32>
    %cst_41 = arith.constant dense<0.000000e+00> : vector<4x32xf32>
    %54 = tpu.matmul %44, %53, %cst_41 {dimension_numbers = #tpu.dot_dimension_numbers<[1], [0], [0], [1], [0, 0, 1, 1], [], []>} : vector<4x32xf32>, vector<32x32xf32>, vector<4x32xf32> -> vector<4x32xf32>
    %55 = arith.addf %52, %54 : vector<4x32xf32>
    %56 = math.tanh %55 : vector<4x32xf32>
    %57 = tpu.concatenate %56, %49 in 1 : vector<4x32xf32>, vector<4x32xf32> -> vector<4x64xf32>
    %c0_42 = arith.constant 0 : index
    %c0_43 = arith.constant 0 : index
    %58 = vector.load %arg5[%c0_42, %c0_43] : memref<64x32xf32, #tpu.memory_space<vmem>>, vector<64x32xf32>
    %cst_44 = arith.constant dense<0.000000e+00> : vector<4x32xf32>
    %59 = tpu.matmul %57, %58, %cst_44 {dimension_numbers = #tpu.dot_dimension_numbers<[1], [0], [0], [1], [0, 0, 1, 1], [], []>} : vector<4x64xf32>, vector<64x32xf32>, vector<4x32xf32> -> vector<4x32xf32>
    %60 = arith.addf %59, %11 : vector<4x32xf32>
    %61 = math.tanh %60 : vector<4x32xf32>
    %c4_i32 = arith.constant 4 : i32
    %62 = arith.index_cast %c4_i32 : i32 to index
    %c0_45 = arith.constant 0 : index
    %c0_46 = arith.constant 0 : index
    %63 = vector.load %arg12[%62, %c0_45, %c0_46] : memref<8x4x32xf32, #tpu.memory_space<vmem>>, vector<1x4x32xf32>
    %64 = vector.shape_cast %63 : vector<1x4x32xf32> to vector<4x32xf32>
    %c0_47 = arith.constant 0 : index
    %c0_48 = arith.constant 0 : index
    %65 = vector.load %arg3[%c0_47, %c0_48] : memref<32x32xf32, #tpu.memory_space<vmem>>, vector<32x32xf32>
    %cst_49 = arith.constant dense<0.000000e+00> : vector<4x32xf32>
    %66 = tpu.matmul %56, %65, %cst_49 {dimension_numbers = #tpu.dot_dimension_numbers<[1], [0], [0], [1], [0, 0, 1, 1], [], []>} : vector<4x32xf32>, vector<32x32xf32>, vector<4x32xf32> -> vector<4x32xf32>
    %67 = arith.addf %64, %66 : vector<4x32xf32>
    %68 = math.tanh %67 : vector<4x32xf32>
    %69 = tpu.concatenate %68, %61 in 1 : vector<4x32xf32>, vector<4x32xf32> -> vector<4x64xf32>
    %c0_50 = arith.constant 0 : index
    %c0_51 = arith.constant 0 : index
    %70 = vector.load %arg5[%c0_50, %c0_51] : memref<64x32xf32, #tpu.memory_space<vmem>>, vector<64x32xf32>
    %cst_52 = arith.constant dense<0.000000e+00> : vector<4x32xf32>
    %71 = tpu.matmul %69, %70, %cst_52 {dimension_numbers = #tpu.dot_dimension_numbers<[1], [0], [0], [1], [0, 0, 1, 1], [], []>} : vector<4x64xf32>, vector<64x32xf32>, vector<4x32xf32> -> vector<4x32xf32>
    %72 = arith.addf %71, %11 : vector<4x32xf32>
    %73 = math.tanh %72 : vector<4x32xf32>
    %c5_i32 = arith.constant 5 : i32
    %74 = arith.index_cast %c5_i32 : i32 to index
    %c0_53 = arith.constant 0 : index
    %c0_54 = arith.constant 0 : index
    %75 = vector.load %arg12[%74, %c0_53, %c0_54] : memref<8x4x32xf32, #tpu.memory_space<vmem>>, vector<1x4x32xf32>
    %76 = vector.shape_cast %75 : vector<1x4x32xf32> to vector<4x32xf32>
    %c0_55 = arith.constant 0 : index
    %c0_56 = arith.constant 0 : index
    %77 = vector.load %arg3[%c0_55, %c0_56] : memref<32x32xf32, #tpu.memory_space<vmem>>, vector<32x32xf32>
    %cst_57 = arith.constant dense<0.000000e+00> : vector<4x32xf32>
    %78 = tpu.matmul %68, %77, %cst_57 {dimension_numbers = #tpu.dot_dimension_numbers<[1], [0], [0], [1], [0, 0, 1, 1], [], []>} : vector<4x32xf32>, vector<32x32xf32>, vector<4x32xf32> -> vector<4x32xf32>
    %79 = arith.addf %76, %78 : vector<4x32xf32>
    %80 = math.tanh %79 : vector<4x32xf32>
    %81 = tpu.concatenate %80, %73 in 1 : vector<4x32xf32>, vector<4x32xf32> -> vector<4x64xf32>
    %c0_58 = arith.constant 0 : index
    %c0_59 = arith.constant 0 : index
    %82 = vector.load %arg5[%c0_58, %c0_59] : memref<64x32xf32, #tpu.memory_space<vmem>>, vector<64x32xf32>
    %cst_60 = arith.constant dense<0.000000e+00> : vector<4x32xf32>
    %83 = tpu.matmul %81, %82, %cst_60 {dimension_numbers = #tpu.dot_dimension_numbers<[1], [0], [0], [1], [0, 0, 1, 1], [], []>} : vector<4x64xf32>, vector<64x32xf32>, vector<4x32xf32> -> vector<4x32xf32>
    %84 = arith.addf %83, %11 : vector<4x32xf32>
    %85 = math.tanh %84 : vector<4x32xf32>
    %c6_i32 = arith.constant 6 : i32
    %86 = arith.index_cast %c6_i32 : i32 to index
    %c0_61 = arith.constant 0 : index
    %c0_62 = arith.constant 0 : index
    %87 = vector.load %arg12[%86, %c0_61, %c0_62] : memref<8x4x32xf32, #tpu.memory_space<vmem>>, vector<1x4x32xf32>
    %88 = vector.shape_cast %87 : vector<1x4x32xf32> to vector<4x32xf32>
    %c0_63 = arith.constant 0 : index
    %c0_64 = arith.constant 0 : index
    %89 = vector.load %arg3[%c0_63, %c0_64] : memref<32x32xf32, #tpu.memory_space<vmem>>, vector<32x32xf32>
    %cst_65 = arith.constant dense<0.000000e+00> : vector<4x32xf32>
    %90 = tpu.matmul %80, %89, %cst_65 {dimension_numbers = #tpu.dot_dimension_numbers<[1], [0], [0], [1], [0, 0, 1, 1], [], []>} : vector<4x32xf32>, vector<32x32xf32>, vector<4x32xf32> -> vector<4x32xf32>
    %91 = arith.addf %88, %90 : vector<4x32xf32>
    %92 = math.tanh %91 : vector<4x32xf32>
    %93 = tpu.concatenate %92, %85 in 1 : vector<4x32xf32>, vector<4x32xf32> -> vector<4x64xf32>
    %c0_66 = arith.constant 0 : index
    %c0_67 = arith.constant 0 : index
    %94 = vector.load %arg5[%c0_66, %c0_67] : memref<64x32xf32, #tpu.memory_space<vmem>>, vector<64x32xf32>
    %cst_68 = arith.constant dense<0.000000e+00> : vector<4x32xf32>
    %95 = tpu.matmul %93, %94, %cst_68 {dimension_numbers = #tpu.dot_dimension_numbers<[1], [0], [0], [1], [0, 0, 1, 1], [], []>} : vector<4x64xf32>, vector<64x32xf32>, vector<4x32xf32> -> vector<4x32xf32>
    %96 = arith.addf %95, %11 : vector<4x32xf32>
    %97 = math.tanh %96 : vector<4x32xf32>
    %c7_i32 = arith.constant 7 : i32
    %98 = arith.index_cast %c7_i32 : i32 to index
    %c0_69 = arith.constant 0 : index
    %c0_70 = arith.constant 0 : index
    %99 = vector.load %arg12[%98, %c0_69, %c0_70] : memref<8x4x32xf32, #tpu.memory_space<vmem>>, vector<1x4x32xf32>
    %100 = vector.shape_cast %99 : vector<1x4x32xf32> to vector<4x32xf32>
    %c0_71 = arith.constant 0 : index
    %c0_72 = arith.constant 0 : index
    %101 = vector.load %arg3[%c0_71, %c0_72] : memref<32x32xf32, #tpu.memory_space<vmem>>, vector<32x32xf32>
    %cst_73 = arith.constant dense<0.000000e+00> : vector<4x32xf32>
    %102 = tpu.matmul %92, %101, %cst_73 {dimension_numbers = #tpu.dot_dimension_numbers<[1], [0], [0], [1], [0, 0, 1, 1], [], []>} : vector<4x32xf32>, vector<32x32xf32>, vector<4x32xf32> -> vector<4x32xf32>
    %103 = arith.addf %100, %102 : vector<4x32xf32>
    %104 = math.tanh %103 : vector<4x32xf32>
    %105 = tpu.concatenate %104, %97 in 1 : vector<4x32xf32>, vector<4x32xf32> -> vector<4x64xf32>
    %c0_74 = arith.constant 0 : index
    %c0_75 = arith.constant 0 : index
    %106 = vector.load %arg5[%c0_74, %c0_75] : memref<64x32xf32, #tpu.memory_space<vmem>>, vector<64x32xf32>
    %cst_76 = arith.constant dense<0.000000e+00> : vector<4x32xf32>
    %107 = tpu.matmul %105, %106, %cst_76 {dimension_numbers = #tpu.dot_dimension_numbers<[1], [0], [0], [1], [0, 0, 1, 1], [], []>} : vector<4x64xf32>, vector<64x32xf32>, vector<4x32xf32> -> vector<4x32xf32>
    %108 = arith.addf %107, %11 : vector<4x32xf32>
    %109 = math.tanh %108 : vector<4x32xf32>
    %c8_i32 = arith.constant 8 : i32
    %c0_77 = arith.constant 0 : index
    %c0_78 = arith.constant 0 : index
    %110 = vector.load %arg7[%c0_77, %c0_78] : memref<32x64xf32, #tpu.memory_space<vmem>>, vector<32x64xf32>
    %cst_79 = arith.constant dense<0.000000e+00> : vector<4x64xf32>
    %111 = tpu.matmul %109, %110, %cst_79 {dimension_numbers = #tpu.dot_dimension_numbers<[1], [0], [0], [1], [0, 0, 1, 1], [], []>} : vector<4x32xf32>, vector<32x64xf32>, vector<4x64xf32> -> vector<4x64xf32>
    %c0_80 = arith.constant 0 : index
    %c0_81 = arith.constant 0 : index
    %112 = vector.load %arg8[%c0_80, %c0_81] : memref<1x64xf32, #tpu.memory_space<vmem>>, vector<1x64xf32>
    %113 = vector.broadcast %112 : vector<1x64xf32> to vector<4x64xf32>
    %114 = arith.addf %111, %113 : vector<4x64xf32>
    %cst_82 = arith.constant 0.000000e+00 : f32
    %115 = vector.broadcast %cst_82 : f32 to vector<4x64xf32>
    %116 = arith.maximumf %114, %115 : vector<4x64xf32>
    %c0_83 = arith.constant 0 : index
    %c0_84 = arith.constant 0 : index
    %117 = vector.load %arg9[%c0_83, %c0_84] : memref<64x128xf32, #tpu.memory_space<vmem>>, vector<64x128xf32>
    %cst_85 = arith.constant dense<0.000000e+00> : vector<4x128xf32>
    %118 = tpu.matmul %116, %117, %cst_85 {dimension_numbers = #tpu.dot_dimension_numbers<[1], [0], [0], [1], [0, 0, 1, 1], [], []>} : vector<4x64xf32>, vector<64x128xf32>, vector<4x128xf32> -> vector<4x128xf32>
    %c0_86 = arith.constant 0 : index
    %c0_87 = arith.constant 0 : index
    %119 = vector.load %arg10[%c0_86, %c0_87] : memref<1x128xf32, #tpu.memory_space<vmem>>, vector<1x128xf32>
    %120 = vector.broadcast %119 : vector<1x128xf32> to vector<4x128xf32>
    %121 = arith.addf %118, %120 : vector<4x128xf32>
    %c0_88 = arith.constant 0 : index
    %c0_89 = arith.constant 0 : index
    %122 = vector.load %arg11[%c0_88, %c0_89] : memref<4x128xf32, #tpu.memory_space<vmem>>, vector<4x128xf32>
    tpu.vector_store %arg11[%c0_88, %c0_89], %121 {strides = array<i32>} : memref<4x128xf32, #tpu.memory_space<vmem>>, vector<4x128xf32>,
    return
  }
  func.func @transform_0(%arg0: i32) -> (i32, i32, i32) {
    %c0_i32 = arith.constant 0 : i32
    %c0_i32_0 = arith.constant 0 : i32
    %c0_i32_1 = arith.constant 0 : i32
    return %c0_i32, %arg0, %c0_i32_0 : i32, i32, i32
  }
  func.func @transform_1(%arg0: i32) -> (i32, i32) {
    %c0_i32 = arith.constant 0 : i32
    %c0_i32_0 = arith.constant 0 : i32
    %c0_i32_1 = arith.constant 0 : i32
    return %c0_i32, %c0_i32_0 : i32, i32
  }
  func.func @transform_2(%arg0: i32) -> (i32, i32) {
    %c0_i32 = arith.constant 0 : i32
    %c0_i32_0 = arith.constant 0 : i32
    %c0_i32_1 = arith.constant 0 : i32
    return %c0_i32, %c0_i32_0 : i32, i32
  }
  func.func @transform_3(%arg0: i32) -> (i32, i32) {
    %c0_i32 = arith.constant 0 : i32
    %c0_i32_0 = arith.constant 0 : i32
    %c0_i32_1 = arith.constant 0 : i32
    return %c0_i32, %c0_i32_0 : i32, i32
  }
  func.func @transform_4(%arg0: i32) -> (i32, i32) {
    %c0_i32 = arith.constant 0 : i32
    %c0_i32_0 = arith.constant 0 : i32
    %c0_i32_1 = arith.constant 0 : i32
    return %c0_i32, %c0_i32_0 : i32, i32
  }
  func.func @transform_5(%arg0: i32) -> (i32, i32) {
    %c0_i32 = arith.constant 0 : i32
    %c0_i32_0 = arith.constant 0 : i32
    %c0_i32_1 = arith.constant 0 : i32
    return %c0_i32, %c0_i32_0 : i32, i32
  }
  func.func @transform_6(%arg0: i32) -> (i32, i32) {
    %c0_i32 = arith.constant 0 : i32
    %c0_i32_0 = arith.constant 0 : i32
    %c0_i32_1 = arith.constant 0 : i32
    return %c0_i32, %c0_i32_0 : i32, i32
  }
  func.func @transform_7(%arg0: i32) -> (i32, i32) {
    %c0_i32 = arith.constant 0 : i32
    %c0_i32_0 = arith.constant 0 : i32
    %c0_i32_1 = arith.constant 0 : i32
    return %c0_i32, %c0_i32_0 : i32, i32
  }
  func.func @transform_8(%arg0: i32) -> (i32, i32) {
    %c0_i32 = arith.constant 0 : i32
    %c0_i32_0 = arith.constant 0 : i32
    %c0_i32_1 = arith.constant 0 : i32
    return %c0_i32, %c0_i32_0 : i32, i32
  }
  func.func @transform_9(%arg0: i32) -> (i32, i32) {
    %c0_i32 = arith.constant 0 : i32
    %c0_i32_0 = arith.constant 0 : i32
    %c0_i32_1 = arith.constant 0 : i32
    return %c0_i32, %c0_i32_0 : i32, i32
  }
  func.func @transform_10(%arg0: i32) -> (i32, i32) {
    %c0_i32 = arith.constant 0 : i32
    %c0_i32_0 = arith.constant 0 : i32
    return %arg0, %c0_i32 : i32, i32
  }
}

</mosaic_0001>

<llo_original>
// kernel: tpu_custom_call.1
$region0: #{tpu_custom_call.1}
  #allocation0 [shape = 'u32[]', space=smem, size = 0x4, offset = 0x4, fixed_abs, tag = 'smem constant byte address 0x4 - core index']
  #allocation1 [shape = 'u32[144,128]{1,0:T(1,128)}', space=vmem, size = 0x12000, scoped, tag = 'internal scratch']
  #allocation2 [shape = 'f32[8,4,32]{2,1,0:T(4,128)}', space=vmem, size = 0x4000, scoped, tag = 'scratch operand']
  %s0 = inlined_call_operand.vmem [shape: f32[8,4,16], index: 0, kind: input, shape index: {}]
  %s1 = inlined_call_operand.hbm [shape: f32[16,32], index: 1, kind: input, shape index: {}]
  %s2 = inlined_call_operand.hbm [shape: f32[32,32], index: 2, kind: input, shape index: {}]
  %s3 = inlined_call_operand.vmem [shape: f32[1,32], index: 3, kind: input, shape index: {}]
  %s4 = inlined_call_operand.vmem [shape: f32[64,32], index: 4, kind: input, shape index: {}]
  %s5 = inlined_call_operand.vmem [shape: f32[1,32], index: 5, kind: input, shape index: {}]
  %s6 = inlined_call_operand.hbm [shape: f32[32,64], index: 6, kind: input, shape index: {}]
  %s7 = inlined_call_operand.vmem [shape: f32[1,64], index: 7, kind: input, shape index: {}]
  %s8 = inlined_call_operand.vmem [shape: f32[64,128], index: 8, kind: input, shape index: {}]
  %s9 = inlined_call_operand.vmem [shape: f32[1,128], index: 9, kind: input, shape index: {}]
  %s10 = inlined_call_operand.hbm [shape: f32[4,128], index: 10, kind: output, shape index: {}]
  %s11 = sld [smem:[#allocation0]]
  $region62: #{tpu_custom_call.1} parent=0
    _
  %s13 = ssub.s32 1, %s11
  %s14 = scalar_select 0, %s13, %s11
  $region1: #{tpu_custom_call.1} parent=0
    #allocation3 [shape = 'u8[8192]{0}', space=vmem, size = 0x2000, scoped, tag = 'input window, operand 1, single buffered']
    #allocation4 [shape = 's32[1]{0}', space=sflag, size = 0x4, scoped, tag = 'scoped memory for tpu_custom_call.1']
    #allocation5 [shape = 's32[1]{0}', space=sflag, size = 0x4, scoped, tag = 'scoped memory for tpu_custom_call.1']
    #allocation6 [shape = 'u8[16384]{0}', space=vmem, size = 0x4000, scoped, tag = 'input window, operand 2, single buffered']
    #allocation7 [shape = 's32[1]{0}', space=sflag, size = 0x4, scoped, tag = 'scoped memory for tpu_custom_call.1']
    #allocation8 [shape = 'u8[16384]{0}', space=vmem, size = 0x4000, scoped, tag = 'input window, operand 6, single buffered']
    #allocation9 [shape = 'u8[2048]{0}', space=vmem, size = 0x800, scoped, tag = 'output window, operand 0, single buffered']
    %15 = vsyncpa [#allocation4], 0
    %16 = vsyncpa [#allocation7], 0
    %17 = vsyncpa [#allocation5], 0
    // Predicated region
    $region2: #{tpu_custom_call.1} parent=1 // pred_check
      _
    $region3: #{tpu_custom_call.1} parent=1 // pred_check_branch
      %19 = sbr.rel (0) target = $region5
    $region4: #{tpu_custom_call.1} parent=1 // pred_region
      _
    $region5: #{tpu_custom_call.1} parent=1 // pred_fallthru
      _
    // Predicated region
    $region6: #{tpu_custom_call.1} parent=1 // pred_check
      _
    $region7: #{tpu_custom_call.1} parent=1 // pred_check_branch
      %21 = sbr.rel (0) target = $region9
    $region8: #{tpu_custom_call.1} parent=1 // pred_region
      %s23 = ssub.s32 256, 256
      %24 = vsyncadd [#allocation4], %s23
      %s25 = sshll.u32 [#allocation3], 4
      %s26 = int_to_ptr.vmem [resolvable:$true] %s25
      %31 = dma.hbm_to_vmem [thread:$0]  %s1, 256, %s26, [#allocation4], 128, 128, 8
    $region9: #{tpu_custom_call.1} parent=1 // pred_fallthru
      _
    // Predicated region
    $region10: #{tpu_custom_call.1} parent=1 // pred_check
      _
    $region11: #{tpu_custom_call.1} parent=1 // pred_check_branch
      %33 = sbr.rel (0) target = $region13
    $region12: #{tpu_custom_call.1} parent=1 // pred_region
      %s35 = ssub.s32 512, 512
      %36 = vsyncadd [#allocation7], %s35
      %s37 = sshll.u32 [#allocation6], 4
      %s38 = int_to_ptr.vmem [resolvable:$true] %s37
      %43 = dma.hbm_to_vmem [thread:$0]  %s2, 512, %s38, [#allocation7], 128, 128, 8
    $region13: #{tpu_custom_call.1} parent=1 // pred_fallthru
      _
    // Predicated region
    $region14: #{tpu_custom_call.1} parent=1 // pred_check
      _
    $region15: #{tpu_custom_call.1} parent=1 // pred_check_branch
      %45 = sbr.rel (0) target = $region17
    $region16: #{tpu_custom_call.1} parent=1 // pred_region
      _
    $region17: #{tpu_custom_call.1} parent=1 // pred_fallthru
      _
    // Predicated region
    $region18: #{tpu_custom_call.1} parent=1 // pred_check
      _
    $region19: #{tpu_custom_call.1} parent=1 // pred_check_branch
      %47 = sbr.rel (0) target = $region21
    $region20: #{tpu_custom_call.1} parent=1 // pred_region
      _
    $region21: #{tpu_custom_call.1} parent=1 // pred_fallthru
      _
    // Predicated region
    $region22: #{tpu_custom_call.1} parent=1 // pred_check
      _
    $region23: #{tpu_custom_call.1} parent=1 // pred_check_branch
      %49 = sbr.rel (0) target = $region25
    $region24: #{tpu_custom_call.1} parent=1 // pred_region
      _
    $region25: #{tpu_custom_call.1} parent=1 // pred_fallthru
      _
    // Predicated region
    $region26: #{tpu_custom_call.1} parent=1 // pred_check
      _
    $region27: #{tpu_custom_call.1} parent=1 // pred_check_branch
      %51 = sbr.rel (0) target = $region29
    $region28: #{tpu_custom_call.1} parent=1 // pred_region
      %s53 = ssub.s32 512, 512
      %54 = vsyncadd [#allocation7], %s53
      %s55 = sshll.u32 [#allocation8], 4
      %s56 = int_to_ptr.vmem [resolvable:$true] %s55
      %61 = dma.hbm_to_vmem [thread:$0]  %s6, 512, %s56, [#allocation7], 128, 128, 8
    $region29: #{tpu_custom_call.1} parent=1 // pred_fallthru
      _
    // Predicated region
    $region30: #{tpu_custom_call.1} parent=1 // pred_check
      _
    $region31: #{tpu_custom_call.1} parent=1 // pred_check_branch
      %63 = sbr.rel (0) target = $region33
    $region32: #{tpu_custom_call.1} parent=1 // pred_region
      _
    $region33: #{tpu_custom_call.1} parent=1 // pred_fallthru
      _
    // Predicated region
    $region34: #{tpu_custom_call.1} parent=1 // pred_check
      _
    $region35: #{tpu_custom_call.1} parent=1 // pred_check_branch
      %65 = sbr.rel (0) target = $region37
    $region36: #{tpu_custom_call.1} parent=1 // pred_region
      _
    $region37: #{tpu_custom_call.1} parent=1 // pred_fallthru
      _
    // Predicated region
    $region38: #{tpu_custom_call.1} parent=1 // pred_check
      _
    $region39: #{tpu_custom_call.1} parent=1 // pred_check_branch
      %67 = sbr.rel (0) target = $region41
    $region40: #{tpu_custom_call.1} parent=1 // pred_region
      _
    $region41: #{tpu_custom_call.1} parent=1 // pred_fallthru
      _
    // Predicated region
    $region42: #{tpu_custom_call.1} parent=1 // pred_check
      _
    $region43: #{tpu_custom_call.1} parent=1 // pred_check_branch
      %69 = sbr.rel (0) target = $region45
    $region44: #{tpu_custom_call.1} parent=1 // pred_region
      %70 = dma.done [#allocation4], 256
    $region45: #{tpu_custom_call.1} parent=1 // pred_fallthru
      _
    // Predicated region
    $region46: #{tpu_custom_call.1} parent=1 // pred_check
      _
    $region47: #{tpu_custom_call.1} parent=1 // pred_check_branch
      %72 = sbr.rel (0) target = $region49
    $region48: #{tpu_custom_call.1} parent=1 // pred_region
      %73 = dma.done [#allocation7], 512
    $region49: #{tpu_custom_call.1} parent=1 // pred_fallthru
      _
    // Predicated region
    $region50: #{tpu_custom_call.1} parent=1 // pred_check
      _
    $region51: #{tpu_custom_call.1} parent=1 // pred_check_branch
      %75 = sbr.rel (0) target = $region53
    $region52: #{tpu_custom_call.1} parent=1 // pred_region
      %76 = dma.done [#allocation7], 512
    $region53: #{tpu_custom_call.1} parent=1 // pred_fallthru
      _
    %v77 = vld [vmem:[%s0] sm:$0xf]
    %v78 = vld [vmem:[%s0 + $0x4] sm:$0xf]
    %v79 = vld [vmem:[%s0 + $0x8] sm:$0xf]
    %v80 = vld [vmem:[%s0 + $0xc] sm:$0xf]
    %v81 = vld [vmem:[%s0 + $0x10] sm:$0xf]
    %v82 = vld [vmem:[%s0 + $0x14] sm:$0xf]
    %v83 = vld [vmem:[%s0 + $0x18] sm:$0xf]
    %v84 = vld [vmem:[%s0 + $0x1c] sm:$0xf]
    %v85 = vld [vmem:[#allocation3] sm:$0xff]
    %v86 = vld [vmem:[#allocation3 + $0x8] sm:$0xff]
    %v87 = vld [vmem:[%s3] sm:$0x1]
    %v89 = vlaneseq
    %v90 = vshrl.u32 %v89, 7
    %v91 = vsub.s32 0, %v90
    %v92 = vrot.slane %v87, %v91
    %v102 = vcombine.low %v77, %v78
    %v103 = vcombine.low %v79, %v80
    %v104 = vcombine.low %v81, %v82
    %v105 = vcombine.low %v83, %v84
    %vm106 = vcmask 130048
    %v107 = vsel %vm106, %v102, 0
    %v109 = vsel %vm106, %v103, 0
    %v111 = vsel %vm106, %v104, 0
    %v113 = vsel %vm106, %v105, 0
    %115 = vmatprep.subr.mxu0 0.0
    %116 = vmatpush1.msra.mxu0 0.0
    %117 = vmatprep.subr.mxu0 0.0
    %118 = vmatpush1.msra.mxu0 0.0
    %119 = vmatprep.subr.mxu0 0.0
    %120 = vmatpush1.msra.mxu0 0.0
    %121 = vmatprep.subr.mxu0 0.0
    %122 = vmatpush1.msra.mxu0 0.0
    %123 = vmatprep.subr.mxu0 0.0
    %124 = vmatpush1.msra.mxu0 0.0
    %125 = vmatprep.subr.mxu0 0.0
    %126 = vmatpush1.msra.mxu0 0.0
    %127 = vmatprep.subr.mxu0 0.0
    %128 = vmatpush1.msra.mxu0 0.0
    %129 = vmatprep.subr.mxu0 0.0
    %130 = vmatpush1.msra.mxu0 0.0
    %131 = vmatprep.subr.mxu0 0.0
    %132 = vmatpush1.msra.mxu0 0.0
    %133 = vmatprep.subr.mxu0 0.0
    %134 = vmatpush1.msra.mxu0 0.0
    %135 = vmatprep.subr.mxu0 0.0
    %136 = vmatpush1.msra.mxu0 0.0
    %137 = vmatprep.subr.mxu0 0.0
    %138 = vmatpush1.msra.mxu0 0.0
    %139 = vmatprep.subr.mxu0 0.0
    %140 = vmatpush1.msra.mxu0 0.0
    %141 = vmatprep.subr.mxu0 0.0
    %142 = vmatpush1.msra.mxu0 0.0
    %143 = vmatprep.subr.mxu0 0.0
    %144 = vmatpush1.msra.mxu0 %v86
    %145 = vmatprep.subr.mxu0 0.0
    %146 = vmatpush1.msra.mxu0 %v85
    %147 = vmatprep.subr.mxu0 0.0
    %148 = vmatpush2.msra.mxu0 0.0
    %149 = vmatprep.subr.mxu0 0.0
    %150 = vmatpush2.msra.mxu0 0.0
    %151 = vmatprep.subr.mxu0 0.0
    %152 = vmatpush2.msra.mxu0 0.0
    %153 = vmatprep.subr.mxu0 0.0
    %154 = vmatpush2.msra.mxu0 0.0
    %155 = vmatprep.subr.mxu0 0.0
    %156 = vmatpush2.msra.mxu0 0.0
    %157 = vmatprep.subr.mxu0 0.0
    %158 = vmatpush2.msra.mxu0 0.0
    %159 = vmatprep.subr.mxu0 0.0
    %160 = vmatpush2.msra.mxu0 0.0
    %161 = vmatprep.subr.mxu0 0.0
    %162 = vmatpush2.msra.mxu0 0.0
    %163 = vmatprep.subr.mxu0 0.0
    %164 = vmatpush2.msra.mxu0 0.0
    %165 = vmatprep.subr.mxu0 0.0
    %166 = vmatpush2.msra.mxu0 0.0
    %167 = vmatprep.subr.mxu0 0.0
    %168 = vmatpush2.msra.mxu0 0.0
    %169 = vmatprep.subr.mxu0 0.0
    %170 = vmatpush2.msra.mxu0 0.0
    %171 = vmatprep.subr.mxu0 0.0
    %172 = vmatpush2.msra.mxu0 0.0
    %173 = vmatprep.subr.mxu0 0.0
    %174 = vmatpush2.msra.mxu0 0.0
    %175 = vmatprep.subr.mxu0 0.0
    %176 = vmatpush2.msra.mxu0 0.0
    %177 = vmatprep.subr.mxu0 0.0
    %178 = vmatpush2.msra.mxu0 0.0
    %179 = vmatprep.mubr.f32.mxu0 0.0
    %180 = vmatmul.mubr.f32.gmra.mxu0 %v107
    %v181 = vpop.f32.mrf.mxu0
    %v182 = vadd.f32 %v92, %v181
    %v183 = vpop.f32.mrf.mxu0
    %184 = vmatprep.mubr.f32.mxu0 0.0
    %185 = vmatmul.mubr.f32.gmra.mxu0 %v109
    %v186 = vpop.f32.mrf.mxu0
    %v187 = vadd.f32 %v92, %v186
    %v188 = vpop.f32.mrf.mxu0
    %189 = vmatprep.mubr.f32.mxu0 0.0
    %190 = vmatmul.mubr.f32.gmra.mxu0 %v111
    %v191 = vpop.f32.mrf.mxu0
    %v192 = vadd.f32 %v92, %v191
    %v193 = vpop.f32.mrf.mxu0
    %194 = vmatprep.mubr.f32.mxu0 0.0
    %195 = vmatmul.mubr.f32.gmra.mxu0 %v113
    %v196 = vpop.f32.mrf.mxu0
    %v197 = vadd.f32 %v92, %v196
    %v198 = vpop.f32.mrf.mxu0
    %199 = vdwg.mxu0
    %v204 = vcombine.high %v182, %v182
    %v205 = vcombine.high %v187, %v187
    %v206 = vcombine.high %v192, %v192
    %v207 = vcombine.high %v197, %v197
    %vm212 = vcmask 257024
    %213 = vst.msk [vmem:[#allocation2] sm:$0xf] %vm212, %v182
    %214 = vst.msk [vmem:[#allocation2 + $0x4] sm:$0xf] %vm212, %v204
    %215 = vst.msk [vmem:[#allocation2 + $0x8] sm:$0xf] %vm212, %v187
    %216 = vst.msk [vmem:[#allocation2 + $0xc] sm:$0xf] %vm212, %v205
    %217 = vst.msk [vmem:[#allocation2 + $0x10] sm:$0xf] %vm212, %v192
    %218 = vst.msk [vmem:[#allocation2 + $0x14] sm:$0xf] %vm212, %v206
    %219 = vst.msk [vmem:[#allocation2 + $0x18] sm:$0xf] %vm212, %v197
    %220 = vst.msk [vmem:[#allocation2 + $0x1c] sm:$0xf] %vm212, %v207
    %v221 = vld [vmem:[%s5] sm:$0x1]
    %v223 = vlaneseq
    %v224 = vshrl.u32 %v223, 7
    %v225 = vsub.s32 0, %v224
    %v226 = vrot.slane %v221, %v225
    %v228 = vld [vmem:[#allocation2] sm:$0xf]
    %v229 = vld [vmem:[#allocation6] sm:$0xff]
    %v230 = vld [vmem:[#allocation6 + $0x8] sm:$0xff]
    %v231 = vld [vmem:[#allocation6 + $0x10] sm:$0xff]
    %v232 = vld [vmem:[#allocation6 + $0x18] sm:$0xff]
    %vm233 = vcmask 261120
    %v235 = vsel %vm233, 0.0, 0
    %237 = vmatprep.subr.mxu0 0.0
    %238 = vmatpush1.msra.mxu0 0.0
    %239 = vmatprep.subr.mxu0 0.0
    %240 = vmatpush1.msra.mxu0 0.0
    %241 = vmatprep.subr.mxu0 0.0
    %242 = vmatpush1.msra.mxu0 0.0
    %243 = vmatprep.subr.mxu0 0.0
    %244 = vmatpush1.msra.mxu0 0.0
    %245 = vmatprep.subr.mxu0 0.0
    %246 = vmatpush1.msra.mxu0 0.0
    %247 = vmatprep.subr.mxu0 0.0
    %248 = vmatpush1.msra.mxu0 0.0
    %249 = vmatprep.subr.mxu0 0.0
    %250 = vmatpush1.msra.mxu0 0.0
    %251 = vmatprep.subr.mxu0 0.0
    %252 = vmatpush1.msra.mxu0 0.0
    %253 = vmatprep.subr.mxu0 0.0
    %254 = vmatpush1.msra.mxu0 0.0
    %255 = vmatprep.subr.mxu0 0.0
    %256 = vmatpush1.msra.mxu0 0.0
    %257 = vmatprep.subr.mxu0 0.0
    %258 = vmatpush1.msra.mxu0 0.0
    %259 = vmatprep.subr.mxu0 0.0
    %260 = vmatpush1.msra.mxu0 0.0
    %261 = vmatprep.subr.mxu0 0.0
    %262 = vmatpush1.msra.mxu0 %v232
    %263 = vmatprep.subr.mxu0 0.0
    %264 = vmatpush1.msra.mxu0 %v231
    %265 = vmatprep.subr.mxu0 0.0
    %266 = vmatpush1.msra.mxu0 %v230
    %267 = vmatprep.subr.mxu0 0.0
    %268 = vmatpush1.msra.mxu0 %v229
    %269 = vmatprep.subr.mxu0 0.0
    %270 = vmatpush2.msra.mxu0 0.0
    %271 = vmatprep.subr.mxu0 0.0
    %272 = vmatpush2.msra.mxu0 0.0
    %273 = vmatprep.subr.mxu0 0.0
    %274 = vmatpush2.msra.mxu0 0.0
    %275 = vmatprep.subr.mxu0 0.0
    %276 = vmatpush2.msra.mxu0 0.0
    %277 = vmatprep.subr.mxu0 0.0
    %278 = vmatpush2.msra.mxu0 0.0
    %279 = vmatprep.subr.mxu0 0.0
    %280 = vmatpush2.msra.mxu0 0.0
    %281 = vmatprep.subr.mxu0 0.0
    %282 = vmatpush2.msra.mxu0 0.0
    %283 = vmatprep.subr.mxu0 0.0
    %284 = vmatpush2.msra.mxu0 0.0
    %285 = vmatprep.subr.mxu0 0.0
    %286 = vmatpush2.msra.mxu0 0.0
    %287 = vmatprep.subr.mxu0 0.0
    %288 = vmatpush2.msra.mxu0 0.0
    %289 = vmatprep.subr.mxu0 0.0
    %290 = vmatpush2.msra.mxu0 0.0
    %291 = vmatprep.subr.mxu0 0.0
    %292 = vmatpush2.msra.mxu0 0.0
    %293 = vmatprep.subr.mxu0 0.0
    %294 = vmatpush2.msra.mxu0 0.0
    %295 = vmatprep.subr.mxu0 0.0
    %296 = vmatpush2.msra.mxu0 0.0
    %297 = vmatprep.subr.mxu0 0.0
    %298 = vmatpush2.msra.mxu0 0.0
    %299 = vmatprep.subr.mxu0 0.0
    %300 = vmatpush2.msra.mxu0 0.0
    %301 = vmatprep.mubr.f32.mxu0 0.0
    %302 = vmatmul.mubr.f32.gmra.mxu0 %v235
    %v303 = vpop.f32.mrf.mxu0
    %v304 = vadd.f32 0.0, %v303
    %v305 = vpop.f32.mrf.mxu0
    %306 = vdwg.mxu0
    %v307 = vadd.f32 %v228, %v304
    %v308 = vtanh.pop %v307
    %v309 = vsel %vm233, %v308, 0.0
    %v310 = vld [vmem:[%s4] sm:$0xff]
    %v311 = vld [vmem:[%s4 + $0x8] sm:$0xff]
    %v312 = vld [vmem:[%s4 + $0x10] sm:$0xff]
    %v313 = vld [vmem:[%s4 + $0x18] sm:$0xff]
    %v314 = vld [vmem:[%s4 + $0x20] sm:$0xff]
    %v315 = vld [vmem:[%s4 + $0x28] sm:$0xff]
    %v316 = vld [vmem:[%s4 + $0x30] sm:$0xff]
    %v317 = vld [vmem:[%s4 + $0x38] sm:$0xff]
    %vm318 = vcmask 523264
    %v320 = vsel %vm318, %v309, 0
    %322 = vmatprep.subr.mxu0 0.0
    %323 = vmatpush1.msra.mxu0 0.0
    %324 = vmatprep.subr.mxu0 0.0
    %325 = vmatpush1.msra.mxu0 0.0
    %326 = vmatprep.subr.mxu0 0.0
    %327 = vmatpush1.msra.mxu0 0.0
    %328 = vmatprep.subr.mxu0 0.0
    %329 = vmatpush1.msra.mxu0 0.0
    %330 = vmatprep.subr.mxu0 0.0
    %331 = vmatpush1.msra.mxu0 0.0
    %332 = vmatprep.subr.mxu0 0.0
    %333 = vmatpush1.msra.mxu0 0.0
    %334 = vmatprep.subr.mxu0 0.0
    %335 = vmatpush1.msra.mxu0 0.0
    %336 = vmatprep.subr.mxu0 0.0
    %337 = vmatpush1.msra.mxu0 0.0
    %338 = vmatprep.subr.mxu0 0.0
    %339 = vmatpush1.msra.mxu0 %v317
    %340 = vmatprep.subr.mxu0 0.0
    %341 = vmatpush1.msra.mxu0 %v316
    %342 = vmatprep.subr.mxu0 0.0
    %343 = vmatpush1.msra.mxu0 %v315
    %344 = vmatprep.subr.mxu0 0.0
    %345 = vmatpush1.msra.mxu0 %v314
    %346 = vmatprep.subr.mxu0 0.0
    %347 = vmatpush1.msra.mxu0 %v313
    %348 = vmatprep.subr.mxu0 0.0
    %349 = vmatpush1.msra.mxu0 %v312
    %350 = vmatprep.subr.mxu0 0.0
    %351 = vmatpush1.msra.mxu0 %v311
    %352 = vmatprep.subr.mxu0 0.0
    %353 = vmatpush1.msra.mxu0 %v310
    %354 = vmatprep.subr.mxu0 0.0
    %355 = vmatpush2.msra.mxu0 0.0
    %356 = vmatprep.subr.mxu0 0.0
    %357 = vmatpush2.msra.mxu0 0.0
    %358 = vmatprep.subr.mxu0 0.0
    %359 = vmatpush2.msra.mxu0 0.0
    %360 = vmatprep.subr.mxu0 0.0
    %361 = vmatpush2.msra.mxu0 0.0
    %362 = vmatprep.subr.mxu0 0.0
    %363 = vmatpush2.msra.mxu0 0.0
    %364 = vmatprep.subr.mxu0 0.0
    %365 = vmatpush2.msra.mxu0 0.0
    %366 = vmatprep.subr.mxu0 0.0
    %367 = vmatpush2.msra.mxu0 0.0
    %368 = vmatprep.subr.mxu0 0.0
    %369 = vmatpush2.msra.mxu0 0.0
    %370 = vmatprep.subr.mxu0 0.0
    %371 = vmatpush2.msra.mxu0 0.0
    %372 = vmatprep.subr.mxu0 0.0
    %373 = vmatpush2.msra.mxu0 0.0
    %374 = vmatprep.subr.mxu0 0.0
    %375 = vmatpush2.msra.mxu0 0.0
    %376 = vmatprep.subr.mxu0 0.0
    %377 = vmatpush2.msra.mxu0 0.0
    %378 = vmatprep.subr.mxu0 0.0
    %379 = vmatpush2.msra.mxu0 0.0
    %380 = vmatprep.subr.mxu0 0.0
    %381 = vmatpush2.msra.mxu0 0.0
    %382 = vmatprep.subr.mxu0 0.0
    %383 = vmatpush2.msra.mxu0 0.0
    %384 = vmatprep.subr.mxu0 0.0
    %385 = vmatpush2.msra.mxu0 0.0
    %386 = vmatprep.mubr.f32.mxu0 0.0
    %387 = vmatmul.mubr.f32.gmra.mxu0 %v320
    %v388 = vpop.f32.mrf.mxu0
    %v389 = vadd.f32 %v226, %v388
    %v390 = vpop.f32.mrf.mxu0
    %391 = vdwg.mxu0
    %v392 = vtanh.pop %v389
    %s393 = scalar_lea.vmem [#allocation2], 4
    %v394 = vld [vmem:[%s393] sm:$0xf]
    %v396 = vsel %vm233, %v308, 0
    %398 = vmatprep.subr.mxu0 0.0
    %399 = vmatpush1.msra.mxu0 0.0
    %400 = vmatprep.subr.mxu0 0.0
    %401 = vmatpush1.msra.mxu0 0.0
    %402 = vmatprep.subr.mxu0 0.0
    %403 = vmatpush1.msra.mxu0 0.0
    %404 = vmatprep.subr.mxu0 0.0
    %405 = vmatpush1.msra.mxu0 0.0
    %406 = vmatprep.subr.mxu0 0.0
    %407 = vmatpush1.msra.mxu0 0.0
    %408 = vmatprep.subr.mxu0 0.0
    %409 = vmatpush1.msra.mxu0 0.0
    %410 = vmatprep.subr.mxu0 0.0
    %411 = vmatpush1.msra.mxu0 0.0
    %412 = vmatprep.subr.mxu0 0.0
    %413 = vmatpush1.msra.mxu0 0.0
    %414 = vmatprep.subr.mxu0 0.0
    %415 = vmatpush1.msra.mxu0 0.0
    %416 = vmatprep.subr.mxu0 0.0
    %417 = vmatpush1.msra.mxu0 0.0
    %418 = vmatprep.subr.mxu0 0.0
    %419 = vmatpush1.msra.mxu0 0.0
    %420 = vmatprep.subr.mxu0 0.0
    %421 = vmatpush1.msra.mxu0 0.0
    %422 = vmatprep.subr.mxu0 0.0
    %423 = vmatpush1.msra.mxu0 %v232
    %424 = vmatprep.subr.mxu0 0.0
    %425 = vmatpush1.msra.mxu0 %v231
    %426 = vmatprep.subr.mxu0 0.0
    %427 = vmatpush1.msra.mxu0 %v230
    %428 = vmatprep.subr.mxu0 0.0
    %429 = vmatpush1.msra.mxu0 %v229
    %430 = vmatprep.subr.mxu0 0.0
    %431 = vmatpush2.msra.mxu0 0.0
    %432 = vmatprep.subr.mxu0 0.0
    %433 = vmatpush2.msra.mxu0 0.0
    %434 = vmatprep.subr.mxu0 0.0
    %435 = vmatpush2.msra.mxu0 0.0
    %436 = vmatprep.subr.mxu0 0.0
    %437 = vmatpush2.msra.mxu0 0.0
    %438 = vmatprep.subr.mxu0 0.0
    %439 = vmatpush2.msra.mxu0 0.0
    %440 = vmatprep.subr.mxu0 0.0
    %441 = vmatpush2.msra.mxu0 0.0
    %442 = vmatprep.subr.mxu0 0.0
    %443 = vmatpush2.msra.mxu0 0.0
    %444 = vmatprep.subr.mxu0 0.0
    %445 = vmatpush2.msra.mxu0 0.0
    %446 = vmatprep.subr.mxu0 0.0
    %447 = vmatpush2.msra.mxu0 0.0
    %448 = vmatprep.subr.mxu0 0.0
    %449 = vmatpush2.msra.mxu0 0.0
    %450 = vmatprep.subr.mxu0 0.0
    %451 = vmatpush2.msra.mxu0 0.0
    %452 = vmatprep.subr.mxu0 0.0
    %453 = vmatpush2.msra.mxu0 0.0
    %454 = vmatprep.subr.mxu0 0.0
    %455 = vmatpush2.msra.mxu0 0.0
    %456 = vmatprep.subr.mxu0 0.0
    %457 = vmatpush2.msra.mxu0 0.0
    %458 = vmatprep.subr.mxu0 0.0
    %459 = vmatpush2.msra.mxu0 0.0
    %460 = vmatprep.subr.mxu0 0.0
    %461 = vmatpush2.msra.mxu0 0.0
    %462 = vmatprep.mubr.f32.mxu0 0.0
    %463 = vmatmul.mubr.f32.gmra.mxu0 %v396
    %v464 = vpop.f32.mrf.mxu0
    %v465 = vadd.f32 0.0, %v464
    %v466 = vpop.f32.mrf.mxu0
    %467 = vdwg.mxu0
    %v468 = vadd.f32 %v394, %v465
    %v469 = vtanh.pop %v468
    %471 = vrot.lane.b32.xlu0 %v392, 32
    %v472 = vpop.permute.xlu0 %471
    %v474 = vsel %vm233, %v469, %v472
    %v476 = vsel %vm318, %v474, 0
    %478 = vmatprep.subr.mxu0 0.0
    %479 = vmatpush1.msra.mxu0 0.0
    %480 = vmatprep.subr.mxu0 0.0
    %481 = vmatpush1.msra.mxu0 0.0
    %482 = vmatprep.subr.mxu0 0.0
    %483 = vmatpush1.msra.mxu0 0.0
    %484 = vmatprep.subr.mxu0 0.0
    %485 = vmatpush1.msra.mxu0 0.0
    %486 = vmatprep.subr.mxu0 0.0
    %487 = vmatpush1.msra.mxu0 0.0
    %488 = vmatprep.subr.mxu0 0.0
    %489 = vmatpush1.msra.mxu0 0.0
    %490 = vmatprep.subr.mxu0 0.0
    %491 = vmatpush1.msra.mxu0 0.0
    %492 = vmatprep.subr.mxu0 0.0
    %493 = vmatpush1.msra.mxu0 0.0
    %494 = vmatprep.subr.mxu0 0.0
    %495 = vmatpush1.msra.mxu0 %v317
    %496 = vmatprep.subr.mxu0 0.0
    %497 = vmatpush1.msra.mxu0 %v316
    %498 = vmatprep.subr.mxu0 0.0
    %499 = vmatpush1.msra.mxu0 %v315
    %500 = vmatprep.subr.mxu0 0.0
    %501 = vmatpush1.msra.mxu0 %v314
    %502 = vmatprep.subr.mxu0 0.0
    %503 = vmatpush1.msra.mxu0 %v313
    %504 = vmatprep.subr.mxu0 0.0
    %505 = vmatpush1.msra.mxu0 %v312
    %506 = vmatprep.subr.mxu0 0.0
    %507 = vmatpush1.msra.mxu0 %v311
    %508 = vmatprep.subr.mxu0 0.0
    %509 = vmatpush1.msra.mxu0 %v310
    %510 = vmatprep.subr.mxu0 0.0
    %511 = vmatpush2.msra.mxu0 0.0
    %512 = vmatprep.subr.mxu0 0.0
    %513 = vmatpush2.msra.mxu0 0.0
    %514 = vmatprep.subr.mxu0 0.0
    %515 = vmatpush2.msra.mxu0 0.0
    %516 = vmatprep.subr.mxu0 0.0
    %517 = vmatpush2.msra.mxu0 0.0
    %518 = vmatprep.subr.mxu0 0.0
    %519 = vmatpush2.msra.mxu0 0.0
    %520 = vmatprep.subr.mxu0 0.0
    %521 = vmatpush2.msra.mxu0 0.0
    %522 = vmatprep.subr.mxu0 0.0
    %523 = vmatpush2.msra.mxu0 0.0
    %524 = vmatprep.subr.mxu0 0.0
    %525 = vmatpush2.msra.mxu0 0.0
    %526 = vmatprep.subr.mxu0 0.0
    %527 = vmatpush2.msra.mxu0 0.0
    %528 = vmatprep.subr.mxu0 0.0
    %529 = vmatpush2.msra.mxu0 0.0
    %530 = vmatprep.subr.mxu0 0.0
    %531 = vmatpush2.msra.mxu0 0.0
    %532 = vmatprep.subr.mxu0 0.0
    %533 = vmatpush2.msra.mxu0 0.0
    %534 = vmatprep.subr.mxu0 0.0
    %535 = vmatpush2.msra.mxu0 0.0
    %536 = vmatprep.subr.mxu0 0.0
    %537 = vmatpush2.msra.mxu0 0.0
    %538 = vmatprep.subr.mxu0 0.0
    %539 = vmatpush2.msra.mxu0 0.0
    %540 = vmatprep.subr.mxu0 0.0
    %541 = vmatpush2.msra.mxu0 0.0
    %542 = vmatprep.mubr.f32.mxu0 0.0
    %543 = vmatmul.mubr.f32.gmra.mxu0 %v476
    %v544 = vpop.f32.mrf.mxu0
    %v545 = vadd.f32 %v226, %v544
    %v546 = vpop.f32.mrf.mxu0
    %547 = vdwg.mxu0
    %v548 = vtanh.pop %v545
    %s549 = scalar_lea.vmem [#allocation2], 8
    %v550 = vld [vmem:[%s549] sm:$0xf]
    %v552 = vsel %vm233, %v469, 0
    %554 = vmatprep.subr.mxu0 0.0
    %555 = vmatpush1.msra.mxu0 0.0
    %556 = vmatprep.subr.mxu0 0.0
    %557 = vmatpush1.msra.mxu0 0.0
    %558 = vmatprep.subr.mxu0 0.0
    %559 = vmatpush1.msra.mxu0 0.0
    %560 = vmatprep.subr.mxu0 0.0
    %561 = vmatpush1.msra.mxu0 0.0
    %562 = vmatprep.subr.mxu0 0.0
    %563 = vmatpush1.msra.mxu0 0.0
    %564 = vmatprep.subr.mxu0 0.0
    %565 = vmatpush1.msra.mxu0 0.0
    %566 = vmatprep.subr.mxu0 0.0
    %567 = vmatpush1.msra.mxu0 0.0
    %568 = vmatprep.subr.mxu0 0.0
    %569 = vmatpush1.msra.mxu0 0.0
    %570 = vmatprep.subr.mxu0 0.0
    %571 = vmatpush1.msra.mxu0 0.0
    %572 = vmatprep.subr.mxu0 0.0
    %573 = vmatpush1.msra.mxu0 0.0
    %574 = vmatprep.subr.mxu0 0.0
    %575 = vmatpush1.msra.mxu0 0.0
    %576 = vmatprep.subr.mxu0 0.0
    %577 = vmatpush1.msra.mxu0 0.0
    %578 = vmatprep.subr.mxu0 0.0
    %579 = vmatpush1.msra.mxu0 %v232
    %580 = vmatprep.subr.mxu0 0.0
    %581 = vmatpush1.msra.mxu0 %v231
    %582 = vmatprep.subr.mxu0 0.0
    %583 = vmatpush1.msra.mxu0 %v230
    %584 = vmatprep.subr.mxu0 0.0
    %585 = vmatpush1.msra.mxu0 %v229
    %586 = vmatprep.subr.mxu0 0.0
    %587 = vmatpush2.msra.mxu0 0.0
    %588 = vmatprep.subr.mxu0 0.0
    %589 = vmatpush2.msra.mxu0 0.0
    %590 = vmatprep.subr.mxu0 0.0
    %591 = vmatpush2.msra.mxu0 0.0
    %592 = vmatprep.subr.mxu0 0.0
    %593 = vmatpush2.msra.mxu0 0.0
    %594 = vmatprep.subr.mxu0 0.0
    %595 = vmatpush2.msra.mxu0 0.0
    %596 = vmatprep.subr.mxu0 0.0
    %597 = vmatpush2.msra.mxu0 0.0
    %598 = vmatprep.subr.mxu0 0.0
    %599 = vmatpush2.msra.mxu0 0.0
    %600 = vmatprep.subr.mxu0 0.0
    %601 = vmatpush2.msra.mxu0 0.0
    %602 = vmatprep.subr.mxu0 0.0
    %603 = vmatpush2.msra.mxu0 0.0
    %604 = vmatprep.subr.mxu0 0.0
    %605 = vmatpush2.msra.mxu0 0.0
    %606 = vmatprep.subr.mxu0 0.0
    %607 = vmatpush2.msra.mxu0 0.0
    %608 = vmatprep.subr.mxu0 0.0
    %609 = vmatpush2.msra.mxu0 0.0
    %610 = vmatprep.subr.mxu0 0.0
    %611 = vmatpush2.msra.mxu0 0.0
    %612 = vmatprep.subr.mxu0 0.0
    %613 = vmatpush2.msra.mxu0 0.0
    %614 = vmatprep.subr.mxu0 0.0
    %615 = vmatpush2.msra.mxu0 0.0
    %616 = vmatprep.subr.mxu0 0.0
    %617 = vmatpush2.msra.mxu0 0.0
    %618 = vmatprep.mubr.f32.mxu0 0.0
    %619 = vmatmul.mubr.f32.gmra.mxu0 %v552
    %v620 = vpop.f32.mrf.mxu0
    %v621 = vadd.f32 0.0, %v620
    %v622 = vpop.f32.mrf.mxu0
    %623 = vdwg.mxu0
    %v624 = vadd.f32 %v550, %v621
    %v625 = vtanh.pop %v624
    %627 = vrot.lane.b32.xlu0 %v548, 32
    %v628 = vpop.permute.xlu0 %627
    %v630 = vsel %vm233, %v625, %v628
    %v632 = vsel %vm318, %v630, 0
    %634 = vmatprep.subr.mxu0 0.0
    %635 = vmatpush1.msra.mxu0 0.0
    %636 = vmatprep.subr.mxu0 0.0
    %637 = vmatpush1.msra.mxu0 0.0
    %638 = vmatprep.subr.mxu0 0.0
    %639 = vmatpush1.msra.mxu0 0.0
    %640 = vmatprep.subr.mxu0 0.0
    %641 = vmatpush1.msra.mxu0 0.0
    %642 = vmatprep.subr.mxu0 0.0
    %643 = vmatpush1.msra.mxu0 0.0
    %644 = vmatprep.subr.mxu0 0.0
    %645 = vmatpush1.msra.mxu0 0.0
    %646 = vmatprep.subr.mxu0 0.0
    %647 = vmatpush1.msra.mxu0 0.0
    %648 = vmatprep.subr.mxu0 0.0
    %649 = vmatpush1.msra.mxu0 0.0
    %650 = vmatprep.subr.mxu0 0.0
    %651 = vmatpush1.msra.mxu0 %v317
    %652 = vmatprep.subr.mxu0 0.0
    %653 = vmatpush1.msra.mxu0 %v316
    %654 = vmatprep.subr.mxu0 0.0
    %655 = vmatpush1.msra.mxu0 %v315
    %656 = vmatprep.subr.mxu0 0.0
    %657 = vmatpush1.msra.mxu0 %v314
    %658 = vmatprep.subr.mxu0 0.0
    %659 = vmatpush1.msra.mxu0 %v313
    %660 = vmatprep.subr.mxu0 0.0
    %661 = vmatpush1.msra.mxu0 %v312
    %662 = vmatprep.subr.mxu0 0.0
    %663 = vmatpush1.msra.mxu0 %v311
    %664 = vmatprep.subr.mxu0 0.0
    %665 = vmatpush1.msra.mxu0 %v310
    %666 = vmatprep.subr.mxu0 0.0
    %667 = vmatpush2.msra.mxu0 0.0
    %668 = vmatprep.subr.mxu0 0.0
    %669 = vmatpush2.msra.mxu0 0.0
    %670 = vmatprep.subr.mxu0 0.0
    %671 = vmatpush2.msra.mxu0 0.0
    %672 = vmatprep.subr.mxu0 0.0
    %673 = vmatpush2.msra.mxu0 0.0
    %674 = vmatprep.subr.mxu0 0.0
    %675 = vmatpush2.msra.mxu0 0.0
    %676 = vmatprep.subr.mxu0 0.0
    %677 = vmatpush2.msra.mxu0 0.0
    %678 = vmatprep.subr.mxu0 0.0
    %679 = vmatpush2.msra.mxu0 0.0
    %680 = vmatprep.subr.mxu0 0.0
    %681 = vmatpush2.msra.mxu0 0.0
    %682 = vmatprep.subr.mxu0 0.0
    %683 = vmatpush2.msra.mxu0 0.0
    %684 = vmatprep.subr.mxu0 0.0
    %685 = vmatpush2.msra.mxu0 0.0
    %686 = vmatprep.subr.mxu0 0.0
    %687 = vmatpush2.msra.mxu0 0.0
    %688 = vmatprep.subr.mxu0 0.0
    %689 = vmatpush2.msra.mxu0 0.0
    %690 = vmatprep.subr.mxu0 0.0
    %691 = vmatpush2.msra.mxu0 0.0
    %692 = vmatprep.subr.mxu0 0.0
    %693 = vmatpush2.msra.mxu0 0.0
    %694 = vmatprep.subr.mxu0 0.0
    %695 = vmatpush2.msra.mxu0 0.0
    %696 = vmatprep.subr.mxu0 0.0
    %697 = vmatpush2.msra.mxu0 0.0
    %698 = vmatprep.mubr.f32.mxu0 0.0
    %699 = vmatmul.mubr.f32.gmra.mxu0 %v632
    %v700 = vpop.f32.mrf.mxu0
    %v701 = vadd.f32 %v226, %v700
    %v702 = vpop.f32.mrf.mxu0
    %703 = vdwg.mxu0
    %v704 = vtanh.pop %v701
    %s705 = scalar_lea.vmem [#allocation2], 12
    %v706 = vld [vmem:[%s705] sm:$0xf]
    %v708 = vsel %vm233, %v625, 0
    %710 = vmatprep.subr.mxu0 0.0
    %711 = vmatpush1.msra.mxu0 0.0
    %712 = vmatprep.subr.mxu0 0.0
    %713 = vmatpush1.msra.mxu0 0.0
    %714 = vmatprep.subr.mxu0 0.0
    %715 = vmatpush1.msra.mxu0 0.0
    %716 = vmatprep.subr.mxu0 0.0
    %717 = vmatpush1.msra.mxu0 0.0
    %718 = vmatprep.subr.mxu0 0.0
    %719 = vmatpush1.msra.mxu0 0.0
    %720 = vmatprep.subr.mxu0 0.0
    %721 = vmatpush1.msra.mxu0 0.0
    %722 = vmatprep.subr.mxu0 0.0
    %723 = vmatpush1.msra.mxu0 0.0
    %724 = vmatprep.subr.mxu0 0.0
    %725 = vmatpush1.msra.mxu0 0.0
    %726 = vmatprep.subr.mxu0 0.0
    %727 = vmatpush1.msra.mxu0 0.0
    %728 = vmatprep.subr.mxu0 0.0
    %729 = vmatpush1.msra.mxu0 0.0
    %730 = vmatprep.subr.mxu0 0.0
    %731 = vmatpush1.msra.mxu0 0.0
    %732 = vmatprep.subr.mxu0 0.0
    %733 = vmatpush1.msra.mxu0 0.0
    %734 = vmatprep.subr.mxu0 0.0
    %735 = vmatpush1.msra.mxu0 %v232
    %736 = vmatprep.subr.mxu0 0.0
    %737 = vmatpush1.msra.mxu0 %v231
    %738 = vmatprep.subr.mxu0 0.0
    %739 = vmatpush1.msra.mxu0 %v230
    %740 = vmatprep.subr.mxu0 0.0
    %741 = vmatpush1.msra.mxu0 %v229
    %742 = vmatprep.subr.mxu0 0.0
    %743 = vmatpush2.msra.mxu0 0.0
    %744 = vmatprep.subr.mxu0 0.0
    %745 = vmatpush2.msra.mxu0 0.0
    %746 = vmatprep.subr.mxu0 0.0
    %747 = vmatpush2.msra.mxu0 0.0
    %748 = vmatprep.subr.mxu0 0.0
    %749 = vmatpush2.msra.mxu0 0.0
    %750 = vmatprep.subr.mxu0 0.0
    %751 = vmatpush2.msra.mxu0 0.0
    %752 = vmatprep.subr.mxu0 0.0
    %753 = vmatpush2.msra.mxu0 0.0
    %754 = vmatprep.subr.mxu0 0.0
    %755 = vmatpush2.msra.mxu0 0.0
    %756 = vmatprep.subr.mxu0 0.0
    %757 = vmatpush2.msra.mxu0 0.0
    %758 = vmatprep.subr.mxu0 0.0
    %759 = vmatpush2.msra.mxu0 0.0
    %760 = vmatprep.subr.mxu0 0.0
    %761 = vmatpush2.msra.mxu0 0.0
    %762 = vmatprep.subr.mxu0 0.0
    %763 = vmatpush2.msra.mxu0 0.0
    %764 = vmatprep.subr.mxu0 0.0
    %765 = vmatpush2.msra.mxu0 0.0
    %766 = vmatprep.subr.mxu0 0.0
    %767 = vmatpush2.msra.mxu0 0.0
    %768 = vmatprep.subr.mxu0 0.0
    %769 = vmatpush2.msra.mxu0 0.0
    %770 = vmatprep.subr.mxu0 0.0
    %771 = vmatpush2.msra.mxu0 0.0
    %772 = vmatprep.subr.mxu0 0.0
    %773 = vmatpush2.msra.mxu0 0.0
    %774 = vmatprep.mubr.f32.mxu0 0.0
    %775 = vmatmul.mubr.f32.gmra.mxu0 %v708
    %v776 = vpop.f32.mrf.mxu0
    %v777 = vadd.f32 0.0, %v776
    %v778 = vpop.f32.mrf.mxu0
    %779 = vdwg.mxu0
    %v780 = vadd.f32 %v706, %v777
    %v781 = vtanh.pop %v780
    %783 = vrot.lane.b32.xlu0 %v704, 32
    %v784 = vpop.permute.xlu0 %783
    %v786 = vsel %vm233, %v781, %v784
    %v788 = vsel %vm318, %v786, 0
    %790 = vmatprep.subr.mxu0 0.0
    %791 = vmatpush1.msra.mxu0 0.0
    %792 = vmatprep.subr.mxu0 0.0
    %793 = vmatpush1.msra.mxu0 0.0
    %794 = vmatprep.subr.mxu0 0.0
    %795 = vmatpush1.msra.mxu0 0.0
    %796 = vmatprep.subr.mxu0 0.0
    %797 = vmatpush1.msra.mxu0 0.0
    %798 = vmatprep.subr.mxu0 0.0
    %799 = vmatpush1.msra.mxu0 0.0
    %800 = vmatprep.subr.mxu0 0.0
    %801 = vmatpush1.msra.mxu0 0.0
    %802 = vmatprep.subr.mxu0 0.0
    %803 = vmatpush1.msra.mxu0 0.0
    %804 = vmatprep.subr.mxu0 0.0
    %805 = vmatpush1.msra.mxu0 0.0
    %806 = vmatprep.subr.mxu0 0.0
    %807 = vmatpush1.msra.mxu0 %v317
    %808 = vmatprep.subr.mxu0 0.0
    %809 = vmatpush1.msra.mxu0 %v316
    %810 = vmatprep.subr.mxu0 0.0
    %811 = vmatpush1.msra.mxu0 %v315
    %812 = vmatprep.subr.mxu0 0.0
    %813 = vmatpush1.msra.mxu0 %v314
    %814 = vmatprep.subr.mxu0 0.0
    %815 = vmatpush1.msra.mxu0 %v313
    %816 = vmatprep.subr.mxu0 0.0
    %817 = vmatpush1.msra.mxu0 %v312
    %818 = vmatprep.subr.mxu0 0.0
    %819 = vmatpush1.msra.mxu0 %v311
    %820 = vmatprep.subr.mxu0 0.0
    %821 = vmatpush1.msra.mxu0 %v310
    %822 = vmatprep.subr.mxu0 0.0
    %823 = vmatpush2.msra.mxu0 0.0
    %824 = vmatprep.subr.mxu0 0.0
    %825 = vmatpush2.msra.mxu0 0.0
    %826 = vmatprep.subr.mxu0 0.0
    %827 = vmatpush2.msra.mxu0 0.0
    %828 = vmatprep.subr.mxu0 0.0
    %829 = vmatpush2.msra.mxu0 0.0
    %830 = vmatprep.subr.mxu0 0.0
    %831 = vmatpush2.msra.mxu0 0.0
    %832 = vmatprep.subr.mxu0 0.0
    %833 = vmatpush2.msra.mxu0 0.0
    %834 = vmatprep.subr.mxu0 0.0
    %835 = vmatpush2.msra.mxu0 0.0
    %836 = vmatprep.subr.mxu0 0.0
    %837 = vmatpush2.msra.mxu0 0.0
    %838 = vmatprep.subr.mxu0 0.0
    %839 = vmatpush2.msra.mxu0 0.0
    %840 = vmatprep.subr.mxu0 0.0
    %841 = vmatpush2.msra.mxu0 0.0
    %842 = vmatprep.subr.mxu0 0.0
    %843 = vmatpush2.msra.mxu0 0.0
    %844 = vmatprep.subr.mxu0 0.0
    %845 = vmatpush2.msra.mxu0 0.0
    %846 = vmatprep.subr.mxu0 0.0
    %847 = vmatpush2.msra.mxu0 0.0
    %848 = vmatprep.subr.mxu0 0.0
    %849 = vmatpush2.msra.mxu0 0.0
    %850 = vmatprep.subr.mxu0 0.0
    %851 = vmatpush2.msra.mxu0 0.0
    %852 = vmatprep.subr.mxu0 0.0
    %853 = vmatpush2.msra.mxu0 0.0
    %854 = vmatprep.mubr.f32.mxu0 0.0
    %855 = vmatmul.mubr.f32.gmra.mxu0 %v788
    %v856 = vpop.f32.mrf.mxu0
    %v857 = vadd.f32 %v226, %v856
    %v858 = vpop.f32.mrf.mxu0
    %859 = vdwg.mxu0
    %v860 = vtanh.pop %v857
    %s861 = scalar_lea.vmem [#allocation2], 16
    %v862 = vld [vmem:[%s861] sm:$0xf]
    %v864 = vsel %vm233, %v781, 0
    %866 = vmatprep.subr.mxu0 0.0
    %867 = vmatpush1.msra.mxu0 0.0
    %868 = vmatprep.subr.mxu0 0.0
    %869 = vmatpush1.msra.mxu0 0.0
    %870 = vmatprep.subr.mxu0 0.0
    %871 = vmatpush1.msra.mxu0 0.0
    %872 = vmatprep.subr.mxu0 0.0
    %873 = vmatpush1.msra.mxu0 0.0
    %874 = vmatprep.subr.mxu0 0.0
    %875 = vmatpush1.msra.mxu0 0.0
    %876 = vmatprep.subr.mxu0 0.0
    %877 = vmatpush1.msra.mxu0 0.0
    %878 = vmatprep.subr.mxu0 0.0
    %879 = vmatpush1.msra.mxu0 0.0
    %880 = vmatprep.subr.mxu0 0.0
    %881 = vmatpush1.msra.mxu0 0.0
    %882 = vmatprep.subr.mxu0 0.0
    %883 = vmatpush1.msra.mxu0 0.0
    %884 = vmatprep.subr.mxu0 0.0
    %885 = vmatpush1.msra.mxu0 0.0
    %886 = vmatprep.subr.mxu0 0.0
    %887 = vmatpush1.msra.mxu0 0.0
    %888 = vmatprep.subr.mxu0 0.0
    %889 = vmatpush1.msra.mxu0 0.0
    %890 = vmatprep.subr.mxu0 0.0
    %891 = vmatpush1.msra.mxu0 %v232
    %892 = vmatprep.subr.mxu0 0.0
    %893 = vmatpush1.msra.mxu0 %v231
    %894 = vmatprep.subr.mxu0 0.0
    %895 = vmatpush1.msra.mxu0 %v230
    %896 = vmatprep.subr.mxu0 0.0
    %897 = vmatpush1.msra.mxu0 %v229
    %898 = vmatprep.subr.mxu0 0.0
    %899 = vmatpush2.msra.mxu0 0.0
    %900 = vmatprep.subr.mxu0 0.0
    %901 = vmatpush2.msra.mxu0 0.0
    %902 = vmatprep.subr.mxu0 0.0
    %903 = vmatpush2.msra.mxu0 0.0
    %904 = vmatprep.subr.mxu0 0.0
    %905 = vmatpush2.msra.mxu0 0.0
    %906 = vmatprep.subr.mxu0 0.0
    %907 = vmatpush2.msra.mxu0 0.0
    %908 = vmatprep.subr.mxu0 0.0
    %909 = vmatpush2.msra.mxu0 0.0
    %910 = vmatprep.subr.mxu0 0.0
    %911 = vmatpush2.msra.mxu0 0.0
    %912 = vmatprep.subr.mxu0 0.0
    %913 = vmatpush2.msra.mxu0 0.0
    %914 = vmatprep.subr.mxu0 0.0
    %915 = vmatpush2.msra.mxu0 0.0
    %916 = vmatprep.subr.mxu0 0.0
    %917 = vmatpush2.msra.mxu0 0.0
    %918 = vmatprep.subr.mxu0 0.0
    %919 = vmatpush2.msra.mxu0 0.0
    %920 = vmatprep.subr.mxu0 0.0
    %921 = vmatpush2.msra.mxu0 0.0
    %922 = vmatprep.subr.mxu0 0.0
    %923 = vmatpush2.msra.mxu0 0.0
    %924 = vmatprep.subr.mxu0 0.0
    %925 = vmatpush2.msra.mxu0 0.0
    %926 = vmatprep.subr.mxu0 0.0
    %927 = vmatpush2.msra.mxu0 0.0
    %928 = vmatprep.subr.mxu0 0.0
    %929 = vmatpush2.msra.mxu0 0.0
    %930 = vmatprep.mubr.f32.mxu0 0.0
    %931 = vmatmul.mubr.f32.gmra.mxu0 %v864
    %v932 = vpop.f32.mrf.mxu0
    %v933 = vadd.f32 0.0, %v932
    %v934 = vpop.f32.mrf.mxu0
    %935 = vdwg.mxu0
    %v936 = vadd.f32 %v862, %v933
    %v937 = vtanh.pop %v936
    %939 = vrot.lane.b32.xlu0 %v860, 32
    %v940 = vpop.permute.xlu0 %939
    %v942 = vsel %vm233, %v937, %v940
    %v944 = vsel %vm318, %v942, 0
    %946 = vmatprep.subr.mxu0 0.0
    %947 = vmatpush1.msra.mxu0 0.0
    %948 = vmatprep.subr.mxu0 0.0
    %949 = vmatpush1.msra.mxu0 0.0
    %950 = vmatprep.subr.mxu0 0.0
    %951 = vmatpush1.msra.mxu0 0.0
    %952 = vmatprep.subr.mxu0 0.0
    %953 = vmatpush1.msra.mxu0 0.0
    %954 = vmatprep.subr.mxu0 0.0
    %955 = vmatpush1.msra.mxu0 0.0
    %956 = vmatprep.subr.mxu0 0.0
    %957 = vmatpush1.msra.mxu0 0.0
    %958 = vmatprep.subr.mxu0 0.0
    %959 = vmatpush1.msra.mxu0 0.0
    %960 = vmatprep.subr.mxu0 0.0
    %961 = vmatpush1.msra.mxu0 0.0
    %962 = vmatprep.subr.mxu0 0.0
    %963 = vmatpush1.msra.mxu0 %v317
    %964 = vmatprep.subr.mxu0 0.0
    %965 = vmatpush1.msra.mxu0 %v316
    %966 = vmatprep.subr.mxu0 0.0
    %967 = vmatpush1.msra.mxu0 %v315
    %968 = vmatprep.subr.mxu0 0.0
    %969 = vmatpush1.msra.mxu0 %v314
    %970 = vmatprep.subr.mxu0 0.0
    %971 = vmatpush1.msra.mxu0 %v313
    %972 = vmatprep.subr.mxu0 0.0
    %973 = vmatpush1.msra.mxu0 %v312
    %974 = vmatprep.subr.mxu0 0.0
    %975 = vmatpush1.msra.mxu0 %v311
    %976 = vmatprep.subr.mxu0 0.0
    %977 = vmatpush1.msra.mxu0 %v310
    %978 = vmatprep.subr.mxu0 0.0
    %979 = vmatpush2.msra.mxu0 0.0
    %980 = vmatprep.subr.mxu0 0.0
    %981 = vmatpush2.msra.mxu0 0.0
    %982 = vmatprep.subr.mxu0 0.0
    %983 = vmatpush2.msra.mxu0 0.0
    %984 = vmatprep.subr.mxu0 0.0
    %985 = vmatpush2.msra.mxu0 0.0
    %986 = vmatprep.subr.mxu0 0.0
    %987 = vmatpush2.msra.mxu0 0.0
    %988 = vmatprep.subr.mxu0 0.0
    %989 = vmatpush2.msra.mxu0 0.0
    %990 = vmatprep.subr.mxu0 0.0
    %991 = vmatpush2.msra.mxu0 0.0
    %992 = vmatprep.subr.mxu0 0.0
    %993 = vmatpush2.msra.mxu0 0.0
    %994 = vmatprep.subr.mxu0 0.0
    %995 = vmatpush2.msra.mxu0 0.0
    %996 = vmatprep.subr.mxu0 0.0
    %997 = vmatpush2.msra.mxu0 0.0
    %998 = vmatprep.subr.mxu0 0.0
    %999 = vmatpush2.msra.mxu0 0.0
    %1000 = vmatprep.subr.mxu0 0.0
    %1001 = vmatpush2.msra.mxu0 0.0
    %1002 = vmatprep.subr.mxu0 0.0
    %1003 = vmatpush2.msra.mxu0 0.0
    %1004 = vmatprep.subr.mxu0 0.0
    %1005 = vmatpush2.msra.mxu0 0.0
    %1006 = vmatprep.subr.mxu0 0.0
    %1007 = vmatpush2.msra.mxu0 0.0
    %1008 = vmatprep.subr.mxu0 0.0
    %1009 = vmatpush2.msra.mxu0 0.0
    %1010 = vmatprep.mubr.f32.mxu0 0.0
    %1011 = vmatmul.mubr.f32.gmra.mxu0 %v944
    %v1012 = vpop.f32.mrf.mxu0
    %v1013 = vadd.f32 %v226, %v1012
    %v1014 = vpop.f32.mrf.mxu0
    %1015 = vdwg.mxu0
    %v1016 = vtanh.pop %v1013
    %s1017 = scalar_lea.vmem [#allocation2], 20
    %v1018 = vld [vmem:[%s1017] sm:$0xf]
    %v1020 = vsel %vm233, %v937, 0
    %1022 = vmatprep.subr.mxu0 0.0
    %1023 = vmatpush1.msra.mxu0 0.0
    %1024 = vmatprep.subr.mxu0 0.0
    %1025 = vmatpush1.msra.mxu0 0.0
    %1026 = vmatprep.subr.mxu0 0.0
    %1027 = vmatpush1.msra.mxu0 0.0
    %1028 = vmatprep.subr.mxu0 0.0
    %1029 = vmatpush1.msra.mxu0 0.0
    %1030 = vmatprep.subr.mxu0 0.0
    %1031 = vmatpush1.msra.mxu0 0.0
    %1032 = vmatprep.subr.mxu0 0.0
    %1033 = vmatpush1.msra.mxu0 0.0
    %1034 = vmatprep.subr.mxu0 0.0
    %1035 = vmatpush1.msra.mxu0 0.0
    %1036 = vmatprep.subr.mxu0 0.0
    %1037 = vmatpush1.msra.mxu0 0.0
    %1038 = vmatprep.subr.mxu0 0.0
    %1039 = vmatpush1.msra.mxu0 0.0
    %1040 = vmatprep.subr.mxu0 0.0
    %1041 = vmatpush1.msra.mxu0 0.0
    %1042 = vmatprep.subr.mxu0 0.0
    %1043 = vmatpush1.msra.mxu0 0.0
    %1044 = vmatprep.subr.mxu0 0.0
    %1045 = vmatpush1.msra.mxu0 0.0
    %1046 = vmatprep.subr.mxu0 0.0
    %1047 = vmatpush1.msra.mxu0 %v232
    %1048 = vmatprep.subr.mxu0 0.0
    %1049 = vmatpush1.msra.mxu0 %v231
    %1050 = vmatprep.subr.mxu0 0.0
    %1051 = vmatpush1.msra.mxu0 %v230
    %1052 = vmatprep.subr.mxu0 0.0
    %1053 = vmatpush1.msra.mxu0 %v229
    %1054 = vmatprep.subr.mxu0 0.0
    %1055 = vmatpush2.msra.mxu0 0.0
    %1056 = vmatprep.subr.mxu0 0.0
    %1057 = vmatpush2.msra.mxu0 0.0
    %1058 = vmatprep.subr.mxu0 0.0
    %1059 = vmatpush2.msra.mxu0 0.0
    %1060 = vmatprep.subr.mxu0 0.0
    %1061 = vmatpush2.msra.mxu0 0.0
    %1062 = vmatprep.subr.mxu0 0.0
    %1063 = vmatpush2.msra.mxu0 0.0
    %1064 = vmatprep.subr.mxu0 0.0
    %1065 = vmatpush2.msra.mxu0 0.0
    %1066 = vmatprep.subr.mxu0 0.0
    %1067 = vmatpush2.msra.mxu0 0.0
    %1068 = vmatprep.subr.mxu0 0.0
    %1069 = vmatpush2.msra.mxu0 0.0
    %1070 = vmatprep.subr.mxu0 0.0
    %1071 = vmatpush2.msra.mxu0 0.0
    %1072 = vmatprep.subr.mxu0 0.0
    %1073 = vmatpush2.msra.mxu0 0.0
    %1074 = vmatprep.subr.mxu0 0.0
    %1075 = vmatpush2.msra.mxu0 0.0
    %1076 = vmatprep.subr.mxu0 0.0
    %1077 = vmatpush2.msra.mxu0 0.0
    %1078 = vmatprep.subr.mxu0 0.0
    %1079 = vmatpush2.msra.mxu0 0.0
    %1080 = vmatprep.subr.mxu0 0.0
    %1081 = vmatpush2.msra.mxu0 0.0
    %1082 = vmatprep.subr.mxu0 0.0
    %1083 = vmatpush2.msra.mxu0 0.0
    %1084 = vmatprep.subr.mxu0 0.0
    %1085 = vmatpush2.msra.mxu0 0.0
    %1086 = vmatprep.mubr.f32.mxu0 0.0
    %1087 = vmatmul.mubr.f32.gmra.mxu0 %v1020
    %v1088 = vpop.f32.mrf.mxu0
    %v1089 = vadd.f32 0.0, %v1088
    %v1090 = vpop.f32.mrf.mxu0
    %1091 = vdwg.mxu0
    %v1092 = vadd.f32 %v1018, %v1089
    %v1093 = vtanh.pop %v1092
    %1095 = vrot.lane.b32.xlu0 %v1016, 32
    %v1096 = vpop.permute.xlu0 %1095
    %v1098 = vsel %vm233, %v1093, %v1096
    %v1100 = vsel %vm318, %v1098, 0
    %1102 = vmatprep.subr.mxu0 0.0
    %1103 = vmatpush1.msra.mxu0 0.0
    %1104 = vmatprep.subr.mxu0 0.0
    %1105 = vmatpush1.msra.mxu0 0.0
    %1106 = vmatprep.subr.mxu0 0.0
    %1107 = vmatpush1.msra.mxu0 0.0
    %1108 = vmatprep.subr.mxu0 0.0
    %1109 = vmatpush1.msra.mxu0 0.0
    %1110 = vmatprep.subr.mxu0 0.0
    %1111 = vmatpush1.msra.mxu0 0.0
    %1112 = vmatprep.subr.mxu0 0.0
    %1113 = vmatpush1.msra.mxu0 0.0
    %1114 = vmatprep.subr.mxu0 0.0
    %1115 = vmatpush1.msra.mxu0 0.0
    %1116 = vmatprep.subr.mxu0 0.0
    %1117 = vmatpush1.msra.mxu0 0.0
    %1118 = vmatprep.subr.mxu0 0.0
    %1119 = vmatpush1.msra.mxu0 %v317
    %1120 = vmatprep.subr.mxu0 0.0
    %1121 = vmatpush1.msra.mxu0 %v316
    %1122 = vmatprep.subr.mxu0 0.0
    %1123 = vmatpush1.msra.mxu0 %v315
    %1124 = vmatprep.subr.mxu0 0.0
    %1125 = vmatpush1.msra.mxu0 %v314
    %1126 = vmatprep.subr.mxu0 0.0
    %1127 = vmatpush1.msra.mxu0 %v313
    %1128 = vmatprep.subr.mxu0 0.0
    %1129 = vmatpush1.msra.mxu0 %v312
    %1130 = vmatprep.subr.mxu0 0.0
    %1131 = vmatpush1.msra.mxu0 %v311
    %1132 = vmatprep.subr.mxu0 0.0
    %1133 = vmatpush1.msra.mxu0 %v310
    %1134 = vmatprep.subr.mxu0 0.0
    %1135 = vmatpush2.msra.mxu0 0.0
    %1136 = vmatprep.subr.mxu0 0.0
    %1137 = vmatpush2.msra.mxu0 0.0
    %1138 = vmatprep.subr.mxu0 0.0
    %1139 = vmatpush2.msra.mxu0 0.0
    %1140 = vmatprep.subr.mxu0 0.0
    %1141 = vmatpush2.msra.mxu0 0.0
    %1142 = vmatprep.subr.mxu0 0.0
    %1143 = vmatpush2.msra.mxu0 0.0
    %1144 = vmatprep.subr.mxu0 0.0
    %1145 = vmatpush2.msra.mxu0 0.0
    %1146 = vmatprep.subr.mxu0 0.0
    %1147 = vmatpush2.msra.mxu0 0.0
    %1148 = vmatprep.subr.mxu0 0.0
    %1149 = vmatpush2.msra.mxu0 0.0
    %1150 = vmatprep.subr.mxu0 0.0
    %1151 = vmatpush2.msra.mxu0 0.0
    %1152 = vmatprep.subr.mxu0 0.0
    %1153 = vmatpush2.msra.mxu0 0.0
    %1154 = vmatprep.subr.mxu0 0.0
    %1155 = vmatpush2.msra.mxu0 0.0
    %1156 = vmatprep.subr.mxu0 0.0
    %1157 = vmatpush2.msra.mxu0 0.0
    %1158 = vmatprep.subr.mxu0 0.0
    %1159 = vmatpush2.msra.mxu0 0.0
    %1160 = vmatprep.subr.mxu0 0.0
    %1161 = vmatpush2.msra.mxu0 0.0
    %1162 = vmatprep.subr.mxu0 0.0
    %1163 = vmatpush2.msra.mxu0 0.0
    %1164 = vmatprep.subr.mxu0 0.0
    %1165 = vmatpush2.msra.mxu0 0.0
    %1166 = vmatprep.mubr.f32.mxu0 0.0
    %1167 = vmatmul.mubr.f32.gmra.mxu0 %v1100
    %v1168 = vpop.f32.mrf.mxu0
    %v1169 = vadd.f32 %v226, %v1168
    %v1170 = vpop.f32.mrf.mxu0
    %1171 = vdwg.mxu0
    %v1172 = vtanh.pop %v1169
    %s1173 = scalar_lea.vmem [#allocation2], 24
    %v1174 = vld [vmem:[%s1173] sm:$0xf]
    %v1176 = vsel %vm233, %v1093, 0
    %1178 = vmatprep.subr.mxu0 0.0
    %1179 = vmatpush1.msra.mxu0 0.0
    %1180 = vmatprep.subr.mxu0 0.0
    %1181 = vmatpush1.msra.mxu0 0.0
    %1182 = vmatprep.subr.mxu0 0.0
    %1183 = vmatpush1.msra.mxu0 0.0
    %1184 = vmatprep.subr.mxu0 0.0
    %1185 = vmatpush1.msra.mxu0 0.0
    %1186 = vmatprep.subr.mxu0 0.0
    %1187 = vmatpush1.msra.mxu0 0.0
    %1188 = vmatprep.subr.mxu0 0.0
    %1189 = vmatpush1.msra.mxu0 0.0
    %1190 = vmatprep.subr.mxu0 0.0
    %1191 = vmatpush1.msra.mxu0 0.0
    %1192 = vmatprep.subr.mxu0 0.0
    %1193 = vmatpush1.msra.mxu0 0.0
    %1194 = vmatprep.subr.mxu0 0.0
    %1195 = vmatpush1.msra.mxu0 0.0
    %1196 = vmatprep.subr.mxu0 0.0
    %1197 = vmatpush1.msra.mxu0 0.0
    %1198 = vmatprep.subr.mxu0 0.0
    %1199 = vmatpush1.msra.mxu0 0.0
    %1200 = vmatprep.subr.mxu0 0.0
    %1201 = vmatpush1.msra.mxu0 0.0
    %1202 = vmatprep.subr.mxu0 0.0
    %1203 = vmatpush1.msra.mxu0 %v232
    %1204 = vmatprep.subr.mxu0 0.0
    %1205 = vmatpush1.msra.mxu0 %v231
    %1206 = vmatprep.subr.mxu0 0.0
    %1207 = vmatpush1.msra.mxu0 %v230
    %1208 = vmatprep.subr.mxu0 0.0
    %1209 = vmatpush1.msra.mxu0 %v229
    %1210 = vmatprep.subr.mxu0 0.0
    %1211 = vmatpush2.msra.mxu0 0.0
    %1212 = vmatprep.subr.mxu0 0.0
    %1213 = vmatpush2.msra.mxu0 0.0
    %1214 = vmatprep.subr.mxu0 0.0
    %1215 = vmatpush2.msra.mxu0 0.0
    %1216 = vmatprep.subr.mxu0 0.0
    %1217 = vmatpush2.msra.mxu0 0.0
    %1218 = vmatprep.subr.mxu0 0.0
    %1219 = vmatpush2.msra.mxu0 0.0
    %1220 = vmatprep.subr.mxu0 0.0
    %1221 = vmatpush2.msra.mxu0 0.0
    %1222 = vmatprep.subr.mxu0 0.0
    %1223 = vmatpush2.msra.mxu0 0.0
    %1224 = vmatprep.subr.mxu0 0.0
    %1225 = vmatpush2.msra.mxu0 0.0
    %1226 = vmatprep.subr.mxu0 0.0
    %1227 = vmatpush2.msra.mxu0 0.0
    %1228 = vmatprep.subr.mxu0 0.0
    %1229 = vmatpush2.msra.mxu0 0.0
    %1230 = vmatprep.subr.mxu0 0.0
    %1231 = vmatpush2.msra.mxu0 0.0
    %1232 = vmatprep.subr.mxu0 0.0
    %1233 = vmatpush2.msra.mxu0 0.0
    %1234 = vmatprep.subr.mxu0 0.0
    %1235 = vmatpush2.msra.mxu0 0.0
    %1236 = vmatprep.subr.mxu0 0.0
    %1237 = vmatpush2.msra.mxu0 0.0
    %1238 = vmatprep.subr.mxu0 0.0
    %1239 = vmatpush2.msra.mxu0 0.0
    %1240 = vmatprep.subr.mxu0 0.0
    %1241 = vmatpush2.msra.mxu0 0.0
    %1242 = vmatprep.mubr.f32.mxu0 0.0
    %1243 = vmatmul.mubr.f32.gmra.mxu0 %v1176
    %v1244 = vpop.f32.mrf.mxu0
    %v1245 = vadd.f32 0.0, %v1244
    %v1246 = vpop.f32.mrf.mxu0
    %1247 = vdwg.mxu0
    %v1248 = vadd.f32 %v1174, %v1245
    %v1249 = vtanh.pop %v1248
    %1251 = vrot.lane.b32.xlu0 %v1172, 32
    %v1252 = vpop.permute.xlu0 %1251
    %v1254 = vsel %vm233, %v1249, %v1252
    %v1256 = vsel %vm318, %v1254, 0
    %1258 = vmatprep.subr.mxu0 0.0
    %1259 = vmatpush1.msra.mxu0 0.0
    %1260 = vmatprep.subr.mxu0 0.0
    %1261 = vmatpush1.msra.mxu0 0.0
    %1262 = vmatprep.subr.mxu0 0.0
    %1263 = vmatpush1.msra.mxu0 0.0
    %1264 = vmatprep.subr.mxu0 0.0
    %1265 = vmatpush1.msra.mxu0 0.0
    %1266 = vmatprep.subr.mxu0 0.0
    %1267 = vmatpush1.msra.mxu0 0.0
    %1268 = vmatprep.subr.mxu0 0.0
    %1269 = vmatpush1.msra.mxu0 0.0
    %1270 = vmatprep.subr.mxu0 0.0
    %1271 = vmatpush1.msra.mxu0 0.0
    %1272 = vmatprep.subr.mxu0 0.0
    %1273 = vmatpush1.msra.mxu0 0.0
    %1274 = vmatprep.subr.mxu0 0.0
    %1275 = vmatpush1.msra.mxu0 %v317
    %1276 = vmatprep.subr.mxu0 0.0
    %1277 = vmatpush1.msra.mxu0 %v316
    %1278 = vmatprep.subr.mxu0 0.0
    %1279 = vmatpush1.msra.mxu0 %v315
    %1280 = vmatprep.subr.mxu0 0.0
    %1281 = vmatpush1.msra.mxu0 %v314
    %1282 = vmatprep.subr.mxu0 0.0
    %1283 = vmatpush1.msra.mxu0 %v313
    %1284 = vmatprep.subr.mxu0 0.0
    %1285 = vmatpush1.msra.mxu0 %v312
    %1286 = vmatprep.subr.mxu0 0.0
    %1287 = vmatpush1.msra.mxu0 %v311
    %1288 = vmatprep.subr.mxu0 0.0
    %1289 = vmatpush1.msra.mxu0 %v310
    %1290 = vmatprep.subr.mxu0 0.0
    %1291 = vmatpush2.msra.mxu0 0.0
    %1292 = vmatprep.subr.mxu0 0.0
    %1293 = vmatpush2.msra.mxu0 0.0
    %1294 = vmatprep.subr.mxu0 0.0
    %1295 = vmatpush2.msra.mxu0 0.0
    %1296 = vmatprep.subr.mxu0 0.0
    %1297 = vmatpush2.msra.mxu0 0.0
    %1298 = vmatprep.subr.mxu0 0.0
    %1299 = vmatpush2.msra.mxu0 0.0
    %1300 = vmatprep.subr.mxu0 0.0
    %1301 = vmatpush2.msra.mxu0 0.0
    %1302 = vmatprep.subr.mxu0 0.0
    %1303 = vmatpush2.msra.mxu0 0.0
    %1304 = vmatprep.subr.mxu0 0.0
    %1305 = vmatpush2.msra.mxu0 0.0
    %1306 = vmatprep.subr.mxu0 0.0
    %1307 = vmatpush2.msra.mxu0 0.0
    %1308 = vmatprep.subr.mxu0 0.0
    %1309 = vmatpush2.msra.mxu0 0.0
    %1310 = vmatprep.subr.mxu0 0.0
    %1311 = vmatpush2.msra.mxu0 0.0
    %1312 = vmatprep.subr.mxu0 0.0
    %1313 = vmatpush2.msra.mxu0 0.0
    %1314 = vmatprep.subr.mxu0 0.0
    %1315 = vmatpush2.msra.mxu0 0.0
    %1316 = vmatprep.subr.mxu0 0.0
    %1317 = vmatpush2.msra.mxu0 0.0
    %1318 = vmatprep.subr.mxu0 0.0
    %1319 = vmatpush2.msra.mxu0 0.0
    %1320 = vmatprep.subr.mxu0 0.0
    %1321 = vmatpush2.msra.mxu0 0.0
    %1322 = vmatprep.mubr.f32.mxu0 0.0
    %1323 = vmatmul.mubr.f32.gmra.mxu0 %v1256
    %v1324 = vpop.f32.mrf.mxu0
    %v1325 = vadd.f32 %v226, %v1324
    %v1326 = vpop.f32.mrf.mxu0
    %1327 = vdwg.mxu0
    %v1328 = vtanh.pop %v1325
    %s1329 = scalar_lea.vmem [#allocation2], 28
    %v1330 = vld [vmem:[%s1329] sm:$0xf]
    %v1332 = vsel %vm233, %v1249, 0
    %1334 = vmatprep.subr.mxu0 0.0
    %1335 = vmatpush1.msra.mxu0 0.0
    %1336 = vmatprep.subr.mxu0 0.0
    %1337 = vmatpush1.msra.mxu0 0.0
    %1338 = vmatprep.subr.mxu0 0.0
    %1339 = vmatpush1.msra.mxu0 0.0
    %1340 = vmatprep.subr.mxu0 0.0
    %1341 = vmatpush1.msra.mxu0 0.0
    %1342 = vmatprep.subr.mxu0 0.0
    %1343 = vmatpush1.msra.mxu0 0.0
    %1344 = vmatprep.subr.mxu0 0.0
    %1345 = vmatpush1.msra.mxu0 0.0
    %1346 = vmatprep.subr.mxu0 0.0
    %1347 = vmatpush1.msra.mxu0 0.0
    %1348 = vmatprep.subr.mxu0 0.0
    %1349 = vmatpush1.msra.mxu0 0.0
    %1350 = vmatprep.subr.mxu0 0.0
    %1351 = vmatpush1.msra.mxu0 0.0
    %1352 = vmatprep.subr.mxu0 0.0
    %1353 = vmatpush1.msra.mxu0 0.0
    %1354 = vmatprep.subr.mxu0 0.0
    %1355 = vmatpush1.msra.mxu0 0.0
    %1356 = vmatprep.subr.mxu0 0.0
    %1357 = vmatpush1.msra.mxu0 0.0
    %1358 = vmatprep.subr.mxu0 0.0
    %1359 = vmatpush1.msra.mxu0 %v232
    %1360 = vmatprep.subr.mxu0 0.0
    %1361 = vmatpush1.msra.mxu0 %v231
    %1362 = vmatprep.subr.mxu0 0.0
    %1363 = vmatpush1.msra.mxu0 %v230
    %1364 = vmatprep.subr.mxu0 0.0
    %1365 = vmatpush1.msra.mxu0 %v229
    %1366 = vmatprep.subr.mxu0 0.0
    %1367 = vmatpush2.msra.mxu0 0.0
    %1368 = vmatprep.subr.mxu0 0.0
    %1369 = vmatpush2.msra.mxu0 0.0
    %1370 = vmatprep.subr.mxu0 0.0
    %1371 = vmatpush2.msra.mxu0 0.0
    %1372 = vmatprep.subr.mxu0 0.0
    %1373 = vmatpush2.msra.mxu0 0.0
    %1374 = vmatprep.subr.mxu0 0.0
    %1375 = vmatpush2.msra.mxu0 0.0
    %1376 = vmatprep.subr.mxu0 0.0
    %1377 = vmatpush2.msra.mxu0 0.0
    %1378 = vmatprep.subr.mxu0 0.0
    %1379 = vmatpush2.msra.mxu0 0.0
    %1380 = vmatprep.subr.mxu0 0.0
    %1381 = vmatpush2.msra.mxu0 0.0
    %1382 = vmatprep.subr.mxu0 0.0
    %1383 = vmatpush2.msra.mxu0 0.0
    %1384 = vmatprep.subr.mxu0 0.0
    %1385 = vmatpush2.msra.mxu0 0.0
    %1386 = vmatprep.subr.mxu0 0.0
    %1387 = vmatpush2.msra.mxu0 0.0
    %1388 = vmatprep.subr.mxu0 0.0
    %1389 = vmatpush2.msra.mxu0 0.0
    %1390 = vmatprep.subr.mxu0 0.0
    %1391 = vmatpush2.msra.mxu0 0.0
    %1392 = vmatprep.subr.mxu0 0.0
    %1393 = vmatpush2.msra.mxu0 0.0
    %1394 = vmatprep.subr.mxu0 0.0
    %1395 = vmatpush2.msra.mxu0 0.0
    %1396 = vmatprep.subr.mxu0 0.0
    %1397 = vmatpush2.msra.mxu0 0.0
    %1398 = vmatprep.mubr.f32.mxu0 0.0
    %1399 = vmatmul.mubr.f32.gmra.mxu0 %v1332
    %v1400 = vpop.f32.mrf.mxu0
    %v1401 = vadd.f32 0.0, %v1400
    %v1402 = vpop.f32.mrf.mxu0
    %1403 = vdwg.mxu0
    %v1404 = vadd.f32 %v1330, %v1401
    %v1405 = vtanh.pop %v1404
    %1407 = vrot.lane.b32.xlu0 %v1328, 32
    %v1408 = vpop.permute.xlu0 %1407
    %v1410 = vsel %vm233, %v1405, %v1408
    %v1412 = vsel %vm318, %v1410, 0
    %1414 = vmatprep.subr.mxu0 0.0
    %1415 = vmatpush1.msra.mxu0 0.0
    %1416 = vmatprep.subr.mxu0 0.0
    %1417 = vmatpush1.msra.mxu0 0.0
    %1418 = vmatprep.subr.mxu0 0.0
    %1419 = vmatpush1.msra.mxu0 0.0
    %1420 = vmatprep.subr.mxu0 0.0
    %1421 = vmatpush1.msra.mxu0 0.0
    %1422 = vmatprep.subr.mxu0 0.0
    %1423 = vmatpush1.msra.mxu0 0.0
    %1424 = vmatprep.subr.mxu0 0.0
    %1425 = vmatpush1.msra.mxu0 0.0
    %1426 = vmatprep.subr.mxu0 0.0
    %1427 = vmatpush1.msra.mxu0 0.0
    %1428 = vmatprep.subr.mxu0 0.0
    %1429 = vmatpush1.msra.mxu0 0.0
    %1430 = vmatprep.subr.mxu0 0.0
    %1431 = vmatpush1.msra.mxu0 %v317
    %1432 = vmatprep.subr.mxu0 0.0
    %1433 = vmatpush1.msra.mxu0 %v316
    %1434 = vmatprep.subr.mxu0 0.0
    %1435 = vmatpush1.msra.mxu0 %v315
    %1436 = vmatprep.subr.mxu0 0.0
    %1437 = vmatpush1.msra.mxu0 %v314
    %1438 = vmatprep.subr.mxu0 0.0
    %1439 = vmatpush1.msra.mxu0 %v313
    %1440 = vmatprep.subr.mxu0 0.0
    %1441 = vmatpush1.msra.mxu0 %v312
    %1442 = vmatprep.subr.mxu0 0.0
    %1443 = vmatpush1.msra.mxu0 %v311
    %1444 = vmatprep.subr.mxu0 0.0
    %1445 = vmatpush1.msra.mxu0 %v310
    %1446 = vmatprep.subr.mxu0 0.0
    %1447 = vmatpush2.msra.mxu0 0.0
    %1448 = vmatprep.subr.mxu0 0.0
    %1449 = vmatpush2.msra.mxu0 0.0
    %1450 = vmatprep.subr.mxu0 0.0
    %1451 = vmatpush2.msra.mxu0 0.0
    %1452 = vmatprep.subr.mxu0 0.0
    %1453 = vmatpush2.msra.mxu0 0.0
    %1454 = vmatprep.subr.mxu0 0.0
    %1455 = vmatpush2.msra.mxu0 0.0
    %1456 = vmatprep.subr.mxu0 0.0
    %1457 = vmatpush2.msra.mxu0 0.0
    %1458 = vmatprep.subr.mxu0 0.0
    %1459 = vmatpush2.msra.mxu0 0.0
    %1460 = vmatprep.subr.mxu0 0.0
    %1461 = vmatpush2.msra.mxu0 0.0
    %1462 = vmatprep.subr.mxu0 0.0
    %1463 = vmatpush2.msra.mxu0 0.0
    %1464 = vmatprep.subr.mxu0 0.0
    %1465 = vmatpush2.msra.mxu0 0.0
    %1466 = vmatprep.subr.mxu0 0.0
    %1467 = vmatpush2.msra.mxu0 0.0
    %1468 = vmatprep.subr.mxu0 0.0
    %1469 = vmatpush2.msra.mxu0 0.0
    %1470 = vmatprep.subr.mxu0 0.0
    %1471 = vmatpush2.msra.mxu0 0.0
    %1472 = vmatprep.subr.mxu0 0.0
    %1473 = vmatpush2.msra.mxu0 0.0
    %1474 = vmatprep.subr.mxu0 0.0
    %1475 = vmatpush2.msra.mxu0 0.0
    %1476 = vmatprep.subr.mxu0 0.0
    %1477 = vmatpush2.msra.mxu0 0.0
    %1478 = vmatprep.mubr.f32.mxu0 0.0
    %1479 = vmatmul.mubr.f32.gmra.mxu0 %v1412
    %v1480 = vpop.f32.mrf.mxu0
    %v1481 = vadd.f32 %v226, %v1480
    %v1482 = vpop.f32.mrf.mxu0
    %1483 = vdwg.mxu0
    %v1484 = vtanh.pop %v1481
    %v1485 = vld [vmem:[#allocation8] sm:$0xff]
    %v1486 = vld [vmem:[#allocation8 + $0x8] sm:$0xff]
    %v1487 = vld [vmem:[#allocation8 + $0x10] sm:$0xff]
    %v1488 = vld [vmem:[#allocation8 + $0x18] sm:$0xff]
    %v1489 = vld [vmem:[%s7] sm:$0x1]
    %v1491 = vlaneseq
    %v1492 = vshrl.u32 %v1491, 7
    %v1493 = vsub.s32 0, %v1492
    %v1494 = vrot.slane %v1489, %v1493
    %v1497 = vsel %vm233, %v1484, 0
    %1499 = vmatprep.subr.mxu0 0.0
    %1500 = vmatpush1.msra.mxu0 0.0
    %1501 = vmatprep.subr.mxu0 0.0
    %1502 = vmatpush1.msra.mxu0 0.0
    %1503 = vmatprep.subr.mxu0 0.0
    %1504 = vmatpush1.msra.mxu0 0.0
    %1505 = vmatprep.subr.mxu0 0.0
    %1506 = vmatpush1.msra.mxu0 0.0
    %1507 = vmatprep.subr.mxu0 0.0
    %1508 = vmatpush1.msra.mxu0 0.0
    %1509 = vmatprep.subr.mxu0 0.0
    %1510 = vmatpush1.msra.mxu0 0.0
    %1511 = vmatprep.subr.mxu0 0.0
    %1512 = vmatpush1.msra.mxu0 0.0
    %1513 = vmatprep.subr.mxu0 0.0
    %1514 = vmatpush1.msra.mxu0 0.0
    %1515 = vmatprep.subr.mxu0 0.0
    %1516 = vmatpush1.msra.mxu0 0.0
    %1517 = vmatprep.subr.mxu0 0.0
    %1518 = vmatpush1.msra.mxu0 0.0
    %1519 = vmatprep.subr.mxu0 0.0
    %1520 = vmatpush1.msra.mxu0 0.0
    %1521 = vmatprep.subr.mxu0 0.0
    %1522 = vmatpush1.msra.mxu0 0.0
    %1523 = vmatprep.subr.mxu0 0.0
    %1524 = vmatpush1.msra.mxu0 %v1488
    %1525 = vmatprep.subr.mxu0 0.0
    %1526 = vmatpush1.msra.mxu0 %v1487
    %1527 = vmatprep.subr.mxu0 0.0
    %1528 = vmatpush1.msra.mxu0 %v1486
    %1529 = vmatprep.subr.mxu0 0.0
    %1530 = vmatpush1.msra.mxu0 %v1485
    %1531 = vmatprep.subr.mxu0 0.0
    %1532 = vmatpush2.msra.mxu0 0.0
    %1533 = vmatprep.subr.mxu0 0.0
    %1534 = vmatpush2.msra.mxu0 0.0
    %1535 = vmatprep.subr.mxu0 0.0
    %1536 = vmatpush2.msra.mxu0 0.0
    %1537 = vmatprep.subr.mxu0 0.0
    %1538 = vmatpush2.msra.mxu0 0.0
    %1539 = vmatprep.subr.mxu0 0.0
    %1540 = vmatpush2.msra.mxu0 0.0
    %1541 = vmatprep.subr.mxu0 0.0
    %1542 = vmatpush2.msra.mxu0 0.0
    %1543 = vmatprep.subr.mxu0 0.0
    %1544 = vmatpush2.msra.mxu0 0.0
    %1545 = vmatprep.subr.mxu0 0.0
    %1546 = vmatpush2.msra.mxu0 0.0
    %1547 = vmatprep.subr.mxu0 0.0
    %1548 = vmatpush2.msra.mxu0 0.0
    %1549 = vmatprep.subr.mxu0 0.0
    %1550 = vmatpush2.msra.mxu0 0.0
    %1551 = vmatprep.subr.mxu0 0.0
    %1552 = vmatpush2.msra.mxu0 0.0
    %1553 = vmatprep.subr.mxu0 0.0
    %1554 = vmatpush2.msra.mxu0 0.0
    %1555 = vmatprep.subr.mxu0 0.0
    %1556 = vmatpush2.msra.mxu0 0.0
    %1557 = vmatprep.subr.mxu0 0.0
    %1558 = vmatpush2.msra.mxu0 0.0
    %1559 = vmatprep.subr.mxu0 0.0
    %1560 = vmatpush2.msra.mxu0 0.0
    %1561 = vmatprep.subr.mxu0 0.0
    %1562 = vmatpush2.msra.mxu0 0.0
    %1563 = vmatprep.mubr.f32.mxu0 0.0
    %1564 = vmatmul.mubr.f32.gmra.mxu0 %v1497
    %v1565 = vpop.f32.mrf.mxu0
    %v1566 = vadd.f32 %v1494, %v1565
    %v1567 = vpop.f32.mrf.mxu0
    %1568 = vdwg.mxu0
    %v1569 = vmax.f32 %v1566, 0.0
    %v1570 = vld [vmem:[%s8] sm:$0xff]
    %v1571 = vld [vmem:[%s8 + $0x8] sm:$0xff]
    %v1572 = vld [vmem:[%s8 + $0x10] sm:$0xff]
    %v1573 = vld [vmem:[%s8 + $0x18] sm:$0xff]
    %v1574 = vld [vmem:[%s8 + $0x20] sm:$0xff]
    %v1575 = vld [vmem:[%s8 + $0x28] sm:$0xff]
    %v1576 = vld [vmem:[%s8 + $0x30] sm:$0xff]
    %v1577 = vld [vmem:[%s8 + $0x38] sm:$0xff]
    %v1578 = vld [vmem:[%s9] sm:$0x1]
    %v1580 = vlaneseq
    %v1581 = vshrl.u32 %v1580, 7
    %v1582 = vsub.s32 0, %v1581
    %v1583 = vrot.slane %v1578, %v1582
    %v1586 = vsel %vm318, %v1569, 0
    %1588 = vmatprep.subr.mxu0 0.0
    %1589 = vmatpush1.msra.mxu0 0.0
    %1590 = vmatprep.subr.mxu0 0.0
    %1591 = vmatpush1.msra.mxu0 0.0
    %1592 = vmatprep.subr.mxu0 0.0
    %1593 = vmatpush1.msra.mxu0 0.0
    %1594 = vmatprep.subr.mxu0 0.0
    %1595 = vmatpush1.msra.mxu0 0.0
    %1596 = vmatprep.subr.mxu0 0.0
    %1597 = vmatpush1.msra.mxu0 0.0
    %1598 = vmatprep.subr.mxu0 0.0
    %1599 = vmatpush1.msra.mxu0 0.0
    %1600 = vmatprep.subr.mxu0 0.0
    %1601 = vmatpush1.msra.mxu0 0.0
    %1602 = vmatprep.subr.mxu0 0.0
    %1603 = vmatpush1.msra.mxu0 0.0
    %1604 = vmatprep.subr.mxu0 0.0
    %1605 = vmatpush1.msra.mxu0 %v1577
    %1606 = vmatprep.subr.mxu0 0.0
    %1607 = vmatpush1.msra.mxu0 %v1576
    %1608 = vmatprep.subr.mxu0 0.0
    %1609 = vmatpush1.msra.mxu0 %v1575
    %1610 = vmatprep.subr.mxu0 0.0
    %1611 = vmatpush1.msra.mxu0 %v1574
    %1612 = vmatprep.subr.mxu0 0.0
    %1613 = vmatpush1.msra.mxu0 %v1573
    %1614 = vmatprep.subr.mxu0 0.0
    %1615 = vmatpush1.msra.mxu0 %v1572
    %1616 = vmatprep.subr.mxu0 0.0
    %1617 = vmatpush1.msra.mxu0 %v1571
    %1618 = vmatprep.subr.mxu0 0.0
    %1619 = vmatpush1.msra.mxu0 %v1570
    %1620 = vmatprep.subr.mxu0 0.0
    %1621 = vmatpush2.msra.mxu0 0.0
    %1622 = vmatprep.subr.mxu0 0.0
    %1623 = vmatpush2.msra.mxu0 0.0
    %1624 = vmatprep.subr.mxu0 0.0
    %1625 = vmatpush2.msra.mxu0 0.0
    %1626 = vmatprep.subr.mxu0 0.0
    %1627 = vmatpush2.msra.mxu0 0.0
    %1628 = vmatprep.subr.mxu0 0.0
    %1629 = vmatpush2.msra.mxu0 0.0
    %1630 = vmatprep.subr.mxu0 0.0
    %1631 = vmatpush2.msra.mxu0 0.0
    %1632 = vmatprep.subr.mxu0 0.0
    %1633 = vmatpush2.msra.mxu0 0.0
    %1634 = vmatprep.subr.mxu0 0.0
    %1635 = vmatpush2.msra.mxu0 0.0
    %1636 = vmatprep.subr.mxu0 0.0
    %1637 = vmatpush2.msra.mxu0 0.0
    %1638 = vmatprep.subr.mxu0 0.0
    %1639 = vmatpush2.msra.mxu0 0.0
    %1640 = vmatprep.subr.mxu0 0.0
    %1641 = vmatpush2.msra.mxu0 0.0
    %1642 = vmatprep.subr.mxu0 0.0
    %1643 = vmatpush2.msra.mxu0 0.0
    %1644 = vmatprep.subr.mxu0 0.0
    %1645 = vmatpush2.msra.mxu0 0.0
    %1646 = vmatprep.subr.mxu0 0.0
    %1647 = vmatpush2.msra.mxu0 0.0
    %1648 = vmatprep.subr.mxu0 0.0
    %1649 = vmatpush2.msra.mxu0 0.0
    %1650 = vmatprep.subr.mxu0 0.0
    %1651 = vmatpush2.msra.mxu0 0.0
    %1652 = vmatprep.mubr.f32.mxu0 0.0
    %1653 = vmatmul.mubr.f32.gmra.mxu0 %v1586
    %v1654 = vpop.f32.mrf.mxu0
    %v1655 = vadd.f32 %v1583, %v1654
    %v1656 = vpop.f32.mrf.mxu0
    %1657 = vdwg.mxu0
    %1658 = vst [vmem:[#allocation9] sm:$0xf] %v1655
    // Predicated region
    $region54: #{tpu_custom_call.1} parent=1 // pred_check
      _
    $region55: #{tpu_custom_call.1} parent=1 // pred_check_branch
      %1660 = sbr.rel (0) target = $region57
    $region56: #{tpu_custom_call.1} parent=1 // pred_region
      %s1662 = ssub.s32 64, 64
      %1663 = vsyncadd [#allocation5], %s1662
      %s1665 = sshll.u32 [#allocation9], 4
      %s1666 = int_to_ptr.vmem [resolvable:$true] %s1665
      %1668 = dma.vmem_to_hbm [thread:$0]  %s1666, 64, %s10, [#allocation5]
    $region57: #{tpu_custom_call.1} parent=1 // pred_fallthru
      _
    // Predicated region
    $region58: #{tpu_custom_call.1} parent=1 // pred_check
      _
    $region59: #{tpu_custom_call.1} parent=1 // pred_check_branch
      %1670 = sbr.rel (0) target = $region61
    $region60: #{tpu_custom_call.1} parent=1 // pred_region
      %1671 = dma.done [#allocation5], 64
    $region61: #{tpu_custom_call.1} parent=1 // pred_fallthru
      _
    %1672 = vsyncpa [#allocation4], 1
    %1673 = vsyncpa [#allocation7], 1
    %1674 = vsyncpa [#allocation5], 1

</llo_original>
